<compile_context>
chip_gen: v7x
topology: tpu7x:2x2x1
jax: 0.10.0
libtpu: 0.0.40
codegen_flags: <defaults>
</compile_context>

<pallas_src>
import functools

import jax
import jax.numpy as jnp
from jax.experimental import pallas as pl
from jax.experimental.pallas import tpu as pltpu


def _round_up(x, m):
    return (x + m - 1) // m * m


def _cdiv(a, b):
    return -(-a // b)


def _vmem_capacity_bytes():
    try:
        info = pltpu.get_tpu_info()
        cap = getattr(info, "vmem_capacity_bytes", None)
        if cap:
            return int(cap)
    except Exception:
        pass
    return 64 * 1024 * 1024          # conservative: v7x per-TensorCore VMEM


def _pick_tile_h(ho, wo, wp, cin, cout, stride, halo_rows, itemsize, budget):
    """Largest output-row tile (multiple of halo_rows) whose double-buffered
    working set (input tile + halo + output tile + f32 intermediates) fits."""
    cap = _round_up(ho, halo_rows)
    best = halo_rows
    th = halo_rows
    while th <= cap:
        body = th * stride
        in_tile = cin * (body + halo_rows) * wp * itemsize
        out_tile = cout * th * wo * itemsize
        work = in_tile + (2 * cin + cout + 1) * th * wo * 4
        if 2 * in_tile + 2 * out_tile + work <= budget:
            best = th
            th += halo_rows
        else:
            break
    return best


def _choose_row_tiling(n, ho, budget_tile, halo_rows):
    tile = budget_tile
    if n == 1 and ho > halo_rows:
        # Megacore: keep at least two row tiles so both TensorCores get work.
        tile = min(tile, _round_up(_cdiv(ho, 2), halo_rows))
    if tile >= ho:
        return ho, 1                 # single full-height tile (no halo needed)
    return tile, _cdiv(ho, tile)


def _dwsep_kernel(*refs, kh, kw, stride, tile_h, wo, cin, cout,
                  use_halo, use_mxu):
    if use_halo:
        body_ref, halo_ref = refs[0], refs[1]
        wrefs = refs[2:-1]
    else:
        body_ref, halo_ref = refs[0], None
        wrefs = refs[1:-1]
    o_ref = refs[-1]

    x = body_ref[0]                                   # (cin, body_rows, wp)
    if use_halo:
        # Halo rows come from a second 8-row block of the SAME HBM array,
        # so only kh-stride rows are re-read (no HBM duplication).
        x = jnp.concatenate([x, halo_ref[0]], axis=1)

    def window(i, j):
        # Tap (i, j): the W offset is a LANE offset (W is the minor dim) ->
        # lane shift on the XLU, not a sublane repack.
        # TODO(synk): stride > 1 uses strided lax.slice; if a Mosaic version
        # rejects it, fall back to slicing the bounding window + gather.
        return jax.lax.slice(
            x, (0, i, j),
            (cin, i + (tile_h - 1) * stride + 1, j + (wo - 1) * stride + 1),
            (1, stride, stride))                      # (cin, tile_h, wo)

    if use_mxu:
        # Large channel counts: depthwise taps folded into the pointwise
        # matmul -> kh*kw MXU matmuls with K = cin, no per-channel broadcast.
        wm_ref, bm_ref = wrefs
        acc = jnp.zeros((cout, tile_h * wo), dtype=jnp.float32)
        for i in range(kh):
            for j in range(kw):
                win = window(i, j).reshape(cin, tile_h * wo)
                acc = acc + jnp.dot(wm_ref[i, j], win,
                                    preferred_element_type=jnp.float32)
        out = acc + bm_ref[...]                       # (cout,1) lane broadcast
        # TODO(synk): the (cout, th*wo) -> (cout, th, wo) split is a VMEM
        # repack when wo % 128 != 0; cheap vs HBM but avoidable for large wo.
        o_ref[0] = out.reshape(cout, tile_h, wo).astype(o_ref.dtype)
    else:
        # Small channel counts: unrolled VPU path, scalars from SMEM,
        # explicit f32 multiply-accumulate.
        dw_ref, pw_ref, b_ref = wrefs
        acc = [jnp.zeros((tile_h, wo), dtype=jnp.float32) for _ in range(cin)]
        for i in range(kh):
            for j in range(kw):
                win = window(i, j)
                for ci in range(cin):
                    w = dw_ref[ci * kh * kw + i * kw + j]
                    acc[ci] = acc[ci] + win[ci].astype(jnp.float32) * w
        for co in range(cout):
            o = acc[0] * pw_ref[co * cin]
            for ci in range(1, cin):
                o = o + acc[ci] * pw_ref[co * cin + ci]
            o_ref[0, co] = (o + b_ref[co]).astype(o_ref.dtype)


def depthwise_separable_conv(x_nchw, dw_weight, dw_bias, pw_weight, pw_bias,
                             *, stride, padding):
    """x_nchw: (N, Cin, H, W); dw_weight: (Cin, 1, kh, kw); dw_bias: (Cin,);
    pw_weight: (Cout, Cin, 1, 1); pw_bias: (Cout,). Returns (N, Cout, Ho, Wo)."""
    n, cin, h, w = (int(d) for d in x_nchw.shape)
    kh, kw = int(dw_weight.shape[2]), int(dw_weight.shape[3])
    cout = int(pw_weight.shape[0])
    ho = (h + 2 * padding - kh) // stride + 1
    wo = (w + 2 * padding - kw) // stride + 1
    dtype = x_nchw.dtype
    itemsize = jnp.dtype(dtype).itemsize

    wp = w + 2 * padding
    halo_rows = max(8, _round_up(max(kh - stride, 1), 8))

    vmem_cap = _vmem_capacity_bytes()
    budget = int(vmem_cap * 0.30)
    vmem_limit = int(vmem_cap * 0.70)

    budget_tile = _pick_tile_h(ho, wo, wp, cin, cout, stride, halo_rows,
                               itemsize, budget)
    tile_h, num_ht = _choose_row_tiling(n, ho, budget_tile, halo_rows)

    if num_ht == 1:
        use_halo = False
        hp = h + 2 * padding
        body_rows = hp                       # full padded height, one block
    else:
        use_halo = kh > stride
        body_rows = tile_h * stride
        hp = max(h + 2 * padding,
                 num_ht * body_rows + (halo_rows if use_halo else 0))
    ho_pad = num_ht * tile_h

    # The only wrapper-side HBM pass: zero-pad the input spatially.
    pad_bottom = hp - h - padding
    if padding > 0 or pad_bottom > 0:
        xp = jnp.pad(x_nchw, ((0, 0), (0, 0),
                              (padding, pad_bottom), (padding, padding)))
    else:
        xp = x_nchw

    dw2 = dw_weight[:, 0, :, :]                       # (cin, kh, kw)
    pw2 = pw_weight[:, :, 0, 0]                       # (cout, cin)
    # Fold depthwise bias into the pointwise bias: pw@(dw_out+db)+pb.
    bias_comb = (pw2.astype(jnp.float32) @ dw_bias.astype(jnp.float32)
                 + pw_bias.astype(jnp.float32))       # (cout,)

    use_mxu = (cin * kh * kw + cin * cout) > 2048
    if use_mxu:
        w_comb = (dw2.astype(jnp.float32).transpose(1, 2, 0)[:, :, None, :]
                  * pw2.astype(jnp.float32)[None, None, :, :])  # (kh,kw,cout,cin)
        weight_args = (w_comb.astype(dtype), bias_comb.reshape(cout, 1))
        weight_specs = [
            pl.BlockSpec((kh, kw, cout, cin), lambda b, t: (0, 0, 0, 0)),
            pl.BlockSpec((cout, 1), lambda b, t: (0, 0)),
        ]
    else:
        weight_args = (dw2.reshape(-1).astype(jnp.float32),
                       pw2.reshape(-1).astype(jnp.float32),
                       bias_comb)
        weight_specs = [pl.BlockSpec(memory_space=pltpu.MemorySpace.SMEM)] * 3

    in_specs = [pl.BlockSpec((1, cin, body_rows, wp),
                             lambda b, t: (b, 0, t, 0))]
    in_args = [xp]
    if use_halo:
        halo_step = body_rows // halo_rows            # integer by construction
        in_specs.append(
            pl.BlockSpec((1, cin, halo_rows, wp),
                         lambda b, t: (b, 0, (t + 1) * halo_step, 0)))
        in_args.append(xp)
    in_specs.extend(weight_specs)
    in_args.extend(weight_args)

    kernel = functools.partial(
        _dwsep_kernel, kh=kh, kw=kw, stride=stride, tile_h=tile_h, wo=wo,
        cin=cin, cout=cout, use_halo=use_halo, use_mxu=use_mxu)

    flops = 2 * n * ho * wo * cin * (kh * kw + cout)
    bytes_accessed = int(n * cin * hp * wp * itemsize
                         + n * cout * ho_pad * wo * itemsize
                         + sum(int(a.size) * 4 for a in weight_args))

    out = pl.pallas_call(
        kernel,
        out_shape=jax.ShapeDtypeStruct((n, cout, ho_pad, wo), dtype),
        grid_spec=pltpu.PrefetchScalarGridSpec(
            num_scalar_prefetch=0,
            grid=(n, num_ht),
            in_specs=in_specs,
            out_specs=pl.BlockSpec((1, cout, tile_h, wo),
                                   lambda b, t: (b, 0, t, 0)),
        ),
        compiler_params=pltpu.CompilerParams(
            dimension_semantics=("parallel", "parallel"),
            vmem_limit_bytes=vmem_limit),
        cost_estimate=pl.CostEstimate(flops=flops, transcendentals=0,
                                      bytes_accessed=bytes_accessed),
    )(*in_args)

    if ho_pad > ho:
        out = out[:, :, :ho, :]
    return out


def _reference(x_nchw, dw_weight, dw_bias, pw_weight, pw_bias, *, stride, padding):
    cin = x_nchw.shape[1]
    dw = jax.lax.conv_general_dilated(
        x_nchw, dw_weight, window_strides=(stride, stride),
        padding=[(padding, padding), (padding, padding)],
        dimension_numbers=("NCHW", "OIHW", "NCHW"),
        feature_group_count=cin)
    dw = dw + dw_bias[None, :, None, None]
    pw = jax.lax.conv_general_dilated(
        dw, pw_weight, window_strides=(1, 1), padding=[(0, 0), (0, 0)],
        dimension_numbers=("NCHW", "OIHW", "NCHW"))
    return pw + pw_bias[None, :, None, None]


if __name__ == "__main__":
    key = jax.random.PRNGKey(0)
    N, CIN, COUT, H, W = 2, 4, 8, 16, 16
    KS, STRIDE, PAD = 3, 1, 1

    k1, k2, k3, k4, k5 = jax.random.split(key, 5)
    x = jax.random.normal(k1, (N, CIN, H, W), dtype=jnp.float32)
    dw_bound = 1.0 / (1 * KS * KS) ** 0.5
    pw_bound = 1.0 / (CIN * 1 * 1) ** 0.5
    dw_weight = jax.random.uniform(k2, (CIN, 1, KS, KS), jnp.float32,
                                   -dw_bound, dw_bound)
    dw_bias = jax.random.uniform(k3, (CIN,), jnp.float32, -dw_bound, dw_bound)
    pw_weight = jax.random.uniform(k4, (COUT, CIN, 1, 1), jnp.float32,
                                   -pw_bound, pw_bound)
    pw_bias = jax.random.uniform(k5, (COUT,), jnp.float32, -pw_bound, pw_bound)

    out = depthwise_separable_conv(x, dw_weight, dw_bias, pw_weight, pw_bias,
                                   stride=STRIDE, padding=PAD)
    out = jax.block_until_ready(out)

    ref = _reference(x, dw_weight, dw_bias, pw_weight, pw_bias,
                     stride=STRIDE, padding=PAD)
    assert out.shape == (N, COUT, H, W), out.shape
    assert jnp.allclose(out, ref, atol=1e-4, rtol=1e-4), \
        float(jnp.max(jnp.abs(out - ref)))
    print("KERNEL_OK")
</pallas_src>

<mosaic_0001>
module attributes {stable_mosaic.version = 11 : i64} {
  func.func @_dwsep_kernel(%arg0: i32, %arg1: i32, %arg2: memref<1x4x18x18xf32, #tpu.memory_space<vmem>>, %arg3: memref<36xf32, #tpu.memory_space<smem>>, %arg4: memref<32xf32, #tpu.memory_space<smem>>, %arg5: memref<8xf32, #tpu.memory_space<smem>>, %arg6: memref<1x8x16x16xf32, #tpu.memory_space<vmem>>) attributes {dimension_semantics = [#tpu.dimension_semantics<parallel>, #tpu.dimension_semantics<parallel>], iteration_bounds = array<i64: 2, 1>, scalar_prefetch = 0 : i64, scratch_operands = 0 : i64, tpu.core_type = #tpu.core_type<tc>, window_params = [{transform_indices = @transform_0, window_bounds = array<i64: 1, 4, 18, 18>}, {transform_indices = @transform_1, window_bounds = array<i64: 36>}, {transform_indices = @transform_2, window_bounds = array<i64: 32>}, {transform_indices = @transform_3, window_bounds = array<i64: 8>}, {transform_indices = @transform_4, window_bounds = array<i64: 1, 8, 16, 16>}]} {
    %c0 = arith.constant 0 : index
    %c0_0 = arith.constant 0 : index
    %c0_1 = arith.constant 0 : index
    %c0_2 = arith.constant 0 : index
    %0 = vector.load %arg2[%c0, %c0_0, %c0_1, %c0_2] : memref<1x4x18x18xf32, #tpu.memory_space<vmem>>, vector<1x4x18x18xf32>
    %1 = vector.shape_cast %0 : vector<1x4x18x18xf32> to vector<4x18x18xf32>
    %cst = arith.constant 0.000000e+00 : f32
    %2 = vector.broadcast %cst : f32 to vector<16x16xf32>
    %cst_3 = arith.constant 0.000000e+00 : f32
    %3 = vector.broadcast %cst_3 : f32 to vector<16x16xf32>
    %cst_4 = arith.constant 0.000000e+00 : f32
    %4 = vector.broadcast %cst_4 : f32 to vector<16x16xf32>
    %cst_5 = arith.constant 0.000000e+00 : f32
    %5 = vector.broadcast %cst_5 : f32 to vector<16x16xf32>
    %6 = vector.extract_strided_slice %1 {offsets = [0, 0, 0], sizes = [4, 16, 16], strides = [1, 1, 1]} : vector<4x18x18xf32> to vector<4x16x16xf32>
    %c0_6 = arith.constant 0 : index
    %7 = memref.load %arg3[%c0_6] : memref<36xf32, #tpu.memory_space<smem>>
    %8 = vector.extract_strided_slice %6 {offsets = [0, 0, 0], sizes = [1, 16, 16], strides = [1, 1, 1]} : vector<4x16x16xf32> to vector<1x16x16xf32>
    %9 = vector.shape_cast %8 : vector<1x16x16xf32> to vector<16x16xf32>
    %10 = vector.broadcast %7 : f32 to vector<16x16xf32>
    %11 = arith.mulf %9, %10 : vector<16x16xf32>
    %12 = arith.addf %2, %11 : vector<16x16xf32>
    %c9 = arith.constant 9 : index
    %13 = memref.load %arg3[%c9] : memref<36xf32, #tpu.memory_space<smem>>
    %14 = vector.extract_strided_slice %6 {offsets = [1, 0, 0], sizes = [1, 16, 16], strides = [1, 1, 1]} : vector<4x16x16xf32> to vector<1x16x16xf32>
    %15 = vector.shape_cast %14 : vector<1x16x16xf32> to vector<16x16xf32>
    %16 = vector.broadcast %13 : f32 to vector<16x16xf32>
    %17 = arith.mulf %15, %16 : vector<16x16xf32>
    %18 = arith.addf %3, %17 : vector<16x16xf32>
    %c18 = arith.constant 18 : index
    %19 = memref.load %arg3[%c18] : memref<36xf32, #tpu.memory_space<smem>>
    %20 = vector.extract_strided_slice %6 {offsets = [2, 0, 0], sizes = [1, 16, 16], strides = [1, 1, 1]} : vector<4x16x16xf32> to vector<1x16x16xf32>
    %21 = vector.shape_cast %20 : vector<1x16x16xf32> to vector<16x16xf32>
    %22 = vector.broadcast %19 : f32 to vector<16x16xf32>
    %23 = arith.mulf %21, %22 : vector<16x16xf32>
    %24 = arith.addf %4, %23 : vector<16x16xf32>
    %c27 = arith.constant 27 : index
    %25 = memref.load %arg3[%c27] : memref<36xf32, #tpu.memory_space<smem>>
    %26 = vector.extract_strided_slice %6 {offsets = [3, 0, 0], sizes = [1, 16, 16], strides = [1, 1, 1]} : vector<4x16x16xf32> to vector<1x16x16xf32>
    %27 = vector.shape_cast %26 : vector<1x16x16xf32> to vector<16x16xf32>
    %28 = vector.broadcast %25 : f32 to vector<16x16xf32>
    %29 = arith.mulf %27, %28 : vector<16x16xf32>
    %30 = arith.addf %5, %29 : vector<16x16xf32>
    %31 = vector.extract_strided_slice %1 {offsets = [0, 0, 1], sizes = [4, 16, 16], strides = [1, 1, 1]} : vector<4x18x18xf32> to vector<4x16x16xf32>
    %c1 = arith.constant 1 : index
    %32 = memref.load %arg3[%c1] : memref<36xf32, #tpu.memory_space<smem>>
    %33 = vector.extract_strided_slice %31 {offsets = [0, 0, 0], sizes = [1, 16, 16], strides = [1, 1, 1]} : vector<4x16x16xf32> to vector<1x16x16xf32>
    %34 = vector.shape_cast %33 : vector<1x16x16xf32> to vector<16x16xf32>
    %35 = vector.broadcast %32 : f32 to vector<16x16xf32>
    %36 = arith.mulf %34, %35 : vector<16x16xf32>
    %37 = arith.addf %12, %36 : vector<16x16xf32>
    %c10 = arith.constant 10 : index
    %38 = memref.load %arg3[%c10] : memref<36xf32, #tpu.memory_space<smem>>
    %39 = vector.extract_strided_slice %31 {offsets = [1, 0, 0], sizes = [1, 16, 16], strides = [1, 1, 1]} : vector<4x16x16xf32> to vector<1x16x16xf32>
    %40 = vector.shape_cast %39 : vector<1x16x16xf32> to vector<16x16xf32>
    %41 = vector.broadcast %38 : f32 to vector<16x16xf32>
    %42 = arith.mulf %40, %41 : vector<16x16xf32>
    %43 = arith.addf %18, %42 : vector<16x16xf32>
    %c19 = arith.constant 19 : index
    %44 = memref.load %arg3[%c19] : memref<36xf32, #tpu.memory_space<smem>>
    %45 = vector.extract_strided_slice %31 {offsets = [2, 0, 0], sizes = [1, 16, 16], strides = [1, 1, 1]} : vector<4x16x16xf32> to vector<1x16x16xf32>
    %46 = vector.shape_cast %45 : vector<1x16x16xf32> to vector<16x16xf32>
    %47 = vector.broadcast %44 : f32 to vector<16x16xf32>
    %48 = arith.mulf %46, %47 : vector<16x16xf32>
    %49 = arith.addf %24, %48 : vector<16x16xf32>
    %c28 = arith.constant 28 : index
    %50 = memref.load %arg3[%c28] : memref<36xf32, #tpu.memory_space<smem>>
    %51 = vector.extract_strided_slice %31 {offsets = [3, 0, 0], sizes = [1, 16, 16], strides = [1, 1, 1]} : vector<4x16x16xf32> to vector<1x16x16xf32>
    %52 = vector.shape_cast %51 : vector<1x16x16xf32> to vector<16x16xf32>
    %53 = vector.broadcast %50 : f32 to vector<16x16xf32>
    %54 = arith.mulf %52, %53 : vector<16x16xf32>
    %55 = arith.addf %30, %54 : vector<16x16xf32>
    %56 = vector.extract_strided_slice %1 {offsets = [0, 0, 2], sizes = [4, 16, 16], strides = [1, 1, 1]} : vector<4x18x18xf32> to vector<4x16x16xf32>
    %c2 = arith.constant 2 : index
    %57 = memref.load %arg3[%c2] : memref<36xf32, #tpu.memory_space<smem>>
    %58 = vector.extract_strided_slice %56 {offsets = [0, 0, 0], sizes = [1, 16, 16], strides = [1, 1, 1]} : vector<4x16x16xf32> to vector<1x16x16xf32>
    %59 = vector.shape_cast %58 : vector<1x16x16xf32> to vector<16x16xf32>
    %60 = vector.broadcast %57 : f32 to vector<16x16xf32>
    %61 = arith.mulf %59, %60 : vector<16x16xf32>
    %62 = arith.addf %37, %61 : vector<16x16xf32>
    %c11 = arith.constant 11 : index
    %63 = memref.load %arg3[%c11] : memref<36xf32, #tpu.memory_space<smem>>
    %64 = vector.extract_strided_slice %56 {offsets = [1, 0, 0], sizes = [1, 16, 16], strides = [1, 1, 1]} : vector<4x16x16xf32> to vector<1x16x16xf32>
    %65 = vector.shape_cast %64 : vector<1x16x16xf32> to vector<16x16xf32>
    %66 = vector.broadcast %63 : f32 to vector<16x16xf32>
    %67 = arith.mulf %65, %66 : vector<16x16xf32>
    %68 = arith.addf %43, %67 : vector<16x16xf32>
    %c20 = arith.constant 20 : index
    %69 = memref.load %arg3[%c20] : memref<36xf32, #tpu.memory_space<smem>>
    %70 = vector.extract_strided_slice %56 {offsets = [2, 0, 0], sizes = [1, 16, 16], strides = [1, 1, 1]} : vector<4x16x16xf32> to vector<1x16x16xf32>
    %71 = vector.shape_cast %70 : vector<1x16x16xf32> to vector<16x16xf32>
    %72 = vector.broadcast %69 : f32 to vector<16x16xf32>
    %73 = arith.mulf %71, %72 : vector<16x16xf32>
    %74 = arith.addf %49, %73 : vector<16x16xf32>
    %c29 = arith.constant 29 : index
    %75 = memref.load %arg3[%c29] : memref<36xf32, #tpu.memory_space<smem>>
    %76 = vector.extract_strided_slice %56 {offsets = [3, 0, 0], sizes = [1, 16, 16], strides = [1, 1, 1]} : vector<4x16x16xf32> to vector<1x16x16xf32>
    %77 = vector.shape_cast %76 : vector<1x16x16xf32> to vector<16x16xf32>
    %78 = vector.broadcast %75 : f32 to vector<16x16xf32>
    %79 = arith.mulf %77, %78 : vector<16x16xf32>
    %80 = arith.addf %55, %79 : vector<16x16xf32>
    %81 = vector.extract_strided_slice %1 {offsets = [0, 1, 0], sizes = [4, 16, 16], strides = [1, 1, 1]} : vector<4x18x18xf32> to vector<4x16x16xf32>
    %c3 = arith.constant 3 : index
    %82 = memref.load %arg3[%c3] : memref<36xf32, #tpu.memory_space<smem>>
    %83 = vector.extract_strided_slice %81 {offsets = [0, 0, 0], sizes = [1, 16, 16], strides = [1, 1, 1]} : vector<4x16x16xf32> to vector<1x16x16xf32>
    %84 = vector.shape_cast %83 : vector<1x16x16xf32> to vector<16x16xf32>
    %85 = vector.broadcast %82 : f32 to vector<16x16xf32>
    %86 = arith.mulf %84, %85 : vector<16x16xf32>
    %87 = arith.addf %62, %86 : vector<16x16xf32>
    %c12 = arith.constant 12 : index
    %88 = memref.load %arg3[%c12] : memref<36xf32, #tpu.memory_space<smem>>
    %89 = vector.extract_strided_slice %81 {offsets = [1, 0, 0], sizes = [1, 16, 16], strides = [1, 1, 1]} : vector<4x16x16xf32> to vector<1x16x16xf32>
    %90 = vector.shape_cast %89 : vector<1x16x16xf32> to vector<16x16xf32>
    %91 = vector.broadcast %88 : f32 to vector<16x16xf32>
    %92 = arith.mulf %90, %91 : vector<16x16xf32>
    %93 = arith.addf %68, %92 : vector<16x16xf32>
    %c21 = arith.constant 21 : index
    %94 = memref.load %arg3[%c21] : memref<36xf32, #tpu.memory_space<smem>>
    %95 = vector.extract_strided_slice %81 {offsets = [2, 0, 0], sizes = [1, 16, 16], strides = [1, 1, 1]} : vector<4x16x16xf32> to vector<1x16x16xf32>
    %96 = vector.shape_cast %95 : vector<1x16x16xf32> to vector<16x16xf32>
    %97 = vector.broadcast %94 : f32 to vector<16x16xf32>
    %98 = arith.mulf %96, %97 : vector<16x16xf32>
    %99 = arith.addf %74, %98 : vector<16x16xf32>
    %c30 = arith.constant 30 : index
    %100 = memref.load %arg3[%c30] : memref<36xf32, #tpu.memory_space<smem>>
    %101 = vector.extract_strided_slice %81 {offsets = [3, 0, 0], sizes = [1, 16, 16], strides = [1, 1, 1]} : vector<4x16x16xf32> to vector<1x16x16xf32>
    %102 = vector.shape_cast %101 : vector<1x16x16xf32> to vector<16x16xf32>
    %103 = vector.broadcast %100 : f32 to vector<16x16xf32>
    %104 = arith.mulf %102, %103 : vector<16x16xf32>
    %105 = arith.addf %80, %104 : vector<16x16xf32>
    %106 = vector.extract_strided_slice %1 {offsets = [0, 1, 1], sizes = [4, 16, 16], strides = [1, 1, 1]} : vector<4x18x18xf32> to vector<4x16x16xf32>
    %c4 = arith.constant 4 : index
    %107 = memref.load %arg3[%c4] : memref<36xf32, #tpu.memory_space<smem>>
    %108 = vector.extract_strided_slice %106 {offsets = [0, 0, 0], sizes = [1, 16, 16], strides = [1, 1, 1]} : vector<4x16x16xf32> to vector<1x16x16xf32>
    %109 = vector.shape_cast %108 : vector<1x16x16xf32> to vector<16x16xf32>
    %110 = vector.broadcast %107 : f32 to vector<16x16xf32>
    %111 = arith.mulf %109, %110 : vector<16x16xf32>
    %112 = arith.addf %87, %111 : vector<16x16xf32>
    %c13 = arith.constant 13 : index
    %113 = memref.load %arg3[%c13] : memref<36xf32, #tpu.memory_space<smem>>
    %114 = vector.extract_strided_slice %106 {offsets = [1, 0, 0], sizes = [1, 16, 16], strides = [1, 1, 1]} : vector<4x16x16xf32> to vector<1x16x16xf32>
    %115 = vector.shape_cast %114 : vector<1x16x16xf32> to vector<16x16xf32>
    %116 = vector.broadcast %113 : f32 to vector<16x16xf32>
    %117 = arith.mulf %115, %116 : vector<16x16xf32>
    %118 = arith.addf %93, %117 : vector<16x16xf32>
    %c22 = arith.constant 22 : index
    %119 = memref.load %arg3[%c22] : memref<36xf32, #tpu.memory_space<smem>>
    %120 = vector.extract_strided_slice %106 {offsets = [2, 0, 0], sizes = [1, 16, 16], strides = [1, 1, 1]} : vector<4x16x16xf32> to vector<1x16x16xf32>
    %121 = vector.shape_cast %120 : vector<1x16x16xf32> to vector<16x16xf32>
    %122 = vector.broadcast %119 : f32 to vector<16x16xf32>
    %123 = arith.mulf %121, %122 : vector<16x16xf32>
    %124 = arith.addf %99, %123 : vector<16x16xf32>
    %c31 = arith.constant 31 : index
    %125 = memref.load %arg3[%c31] : memref<36xf32, #tpu.memory_space<smem>>
    %126 = vector.extract_strided_slice %106 {offsets = [3, 0, 0], sizes = [1, 16, 16], strides = [1, 1, 1]} : vector<4x16x16xf32> to vector<1x16x16xf32>
    %127 = vector.shape_cast %126 : vector<1x16x16xf32> to vector<16x16xf32>
    %128 = vector.broadcast %125 : f32 to vector<16x16xf32>
    %129 = arith.mulf %127, %128 : vector<16x16xf32>
    %130 = arith.addf %105, %129 : vector<16x16xf32>
    %131 = vector.extract_strided_slice %1 {offsets = [0, 1, 2], sizes = [4, 16, 16], strides = [1, 1, 1]} : vector<4x18x18xf32> to vector<4x16x16xf32>
    %c5 = arith.constant 5 : index
    %132 = memref.load %arg3[%c5] : memref<36xf32, #tpu.memory_space<smem>>
    %133 = vector.extract_strided_slice %131 {offsets = [0, 0, 0], sizes = [1, 16, 16], strides = [1, 1, 1]} : vector<4x16x16xf32> to vector<1x16x16xf32>
    %134 = vector.shape_cast %133 : vector<1x16x16xf32> to vector<16x16xf32>
    %135 = vector.broadcast %132 : f32 to vector<16x16xf32>
    %136 = arith.mulf %134, %135 : vector<16x16xf32>
    %137 = arith.addf %112, %136 : vector<16x16xf32>
    %c14 = arith.constant 14 : index
    %138 = memref.load %arg3[%c14] : memref<36xf32, #tpu.memory_space<smem>>
    %139 = vector.extract_strided_slice %131 {offsets = [1, 0, 0], sizes = [1, 16, 16], strides = [1, 1, 1]} : vector<4x16x16xf32> to vector<1x16x16xf32>
    %140 = vector.shape_cast %139 : vector<1x16x16xf32> to vector<16x16xf32>
    %141 = vector.broadcast %138 : f32 to vector<16x16xf32>
    %142 = arith.mulf %140, %141 : vector<16x16xf32>
    %143 = arith.addf %118, %142 : vector<16x16xf32>
    %c23 = arith.constant 23 : index
    %144 = memref.load %arg3[%c23] : memref<36xf32, #tpu.memory_space<smem>>
    %145 = vector.extract_strided_slice %131 {offsets = [2, 0, 0], sizes = [1, 16, 16], strides = [1, 1, 1]} : vector<4x16x16xf32> to vector<1x16x16xf32>
    %146 = vector.shape_cast %145 : vector<1x16x16xf32> to vector<16x16xf32>
    %147 = vector.broadcast %144 : f32 to vector<16x16xf32>
    %148 = arith.mulf %146, %147 : vector<16x16xf32>
    %149 = arith.addf %124, %148 : vector<16x16xf32>
    %c32 = arith.constant 32 : index
    %150 = memref.load %arg3[%c32] : memref<36xf32, #tpu.memory_space<smem>>
    %151 = vector.extract_strided_slice %131 {offsets = [3, 0, 0], sizes = [1, 16, 16], strides = [1, 1, 1]} : vector<4x16x16xf32> to vector<1x16x16xf32>
    %152 = vector.shape_cast %151 : vector<1x16x16xf32> to vector<16x16xf32>
    %153 = vector.broadcast %150 : f32 to vector<16x16xf32>
    %154 = arith.mulf %152, %153 : vector<16x16xf32>
    %155 = arith.addf %130, %154 : vector<16x16xf32>
    %156 = vector.extract_strided_slice %1 {offsets = [0, 2, 0], sizes = [4, 16, 16], strides = [1, 1, 1]} : vector<4x18x18xf32> to vector<4x16x16xf32>
    %c6 = arith.constant 6 : index
    %157 = memref.load %arg3[%c6] : memref<36xf32, #tpu.memory_space<smem>>
    %158 = vector.extract_strided_slice %156 {offsets = [0, 0, 0], sizes = [1, 16, 16], strides = [1, 1, 1]} : vector<4x16x16xf32> to vector<1x16x16xf32>
    %159 = vector.shape_cast %158 : vector<1x16x16xf32> to vector<16x16xf32>
    %160 = vector.broadcast %157 : f32 to vector<16x16xf32>
    %161 = arith.mulf %159, %160 : vector<16x16xf32>
    %162 = arith.addf %137, %161 : vector<16x16xf32>
    %c15 = arith.constant 15 : index
    %163 = memref.load %arg3[%c15] : memref<36xf32, #tpu.memory_space<smem>>
    %164 = vector.extract_strided_slice %156 {offsets = [1, 0, 0], sizes = [1, 16, 16], strides = [1, 1, 1]} : vector<4x16x16xf32> to vector<1x16x16xf32>
    %165 = vector.shape_cast %164 : vector<1x16x16xf32> to vector<16x16xf32>
    %166 = vector.broadcast %163 : f32 to vector<16x16xf32>
    %167 = arith.mulf %165, %166 : vector<16x16xf32>
    %168 = arith.addf %143, %167 : vector<16x16xf32>
    %c24 = arith.constant 24 : index
    %169 = memref.load %arg3[%c24] : memref<36xf32, #tpu.memory_space<smem>>
    %170 = vector.extract_strided_slice %156 {offsets = [2, 0, 0], sizes = [1, 16, 16], strides = [1, 1, 1]} : vector<4x16x16xf32> to vector<1x16x16xf32>
    %171 = vector.shape_cast %170 : vector<1x16x16xf32> to vector<16x16xf32>
    %172 = vector.broadcast %169 : f32 to vector<16x16xf32>
    %173 = arith.mulf %171, %172 : vector<16x16xf32>
    %174 = arith.addf %149, %173 : vector<16x16xf32>
    %c33 = arith.constant 33 : index
    %175 = memref.load %arg3[%c33] : memref<36xf32, #tpu.memory_space<smem>>
    %176 = vector.extract_strided_slice %156 {offsets = [3, 0, 0], sizes = [1, 16, 16], strides = [1, 1, 1]} : vector<4x16x16xf32> to vector<1x16x16xf32>
    %177 = vector.shape_cast %176 : vector<1x16x16xf32> to vector<16x16xf32>
    %178 = vector.broadcast %175 : f32 to vector<16x16xf32>
    %179 = arith.mulf %177, %178 : vector<16x16xf32>
    %180 = arith.addf %155, %179 : vector<16x16xf32>
    %181 = vector.extract_strided_slice %1 {offsets = [0, 2, 1], sizes = [4, 16, 16], strides = [1, 1, 1]} : vector<4x18x18xf32> to vector<4x16x16xf32>
    %c7 = arith.constant 7 : index
    %182 = memref.load %arg3[%c7] : memref<36xf32, #tpu.memory_space<smem>>
    %183 = vector.extract_strided_slice %181 {offsets = [0, 0, 0], sizes = [1, 16, 16], strides = [1, 1, 1]} : vector<4x16x16xf32> to vector<1x16x16xf32>
    %184 = vector.shape_cast %183 : vector<1x16x16xf32> to vector<16x16xf32>
    %185 = vector.broadcast %182 : f32 to vector<16x16xf32>
    %186 = arith.mulf %184, %185 : vector<16x16xf32>
    %187 = arith.addf %162, %186 : vector<16x16xf32>
    %c16 = arith.constant 16 : index
    %188 = memref.load %arg3[%c16] : memref<36xf32, #tpu.memory_space<smem>>
    %189 = vector.extract_strided_slice %181 {offsets = [1, 0, 0], sizes = [1, 16, 16], strides = [1, 1, 1]} : vector<4x16x16xf32> to vector<1x16x16xf32>
    %190 = vector.shape_cast %189 : vector<1x16x16xf32> to vector<16x16xf32>
    %191 = vector.broadcast %188 : f32 to vector<16x16xf32>
    %192 = arith.mulf %190, %191 : vector<16x16xf32>
    %193 = arith.addf %168, %192 : vector<16x16xf32>
    %c25 = arith.constant 25 : index
    %194 = memref.load %arg3[%c25] : memref<36xf32, #tpu.memory_space<smem>>
    %195 = vector.extract_strided_slice %181 {offsets = [2, 0, 0], sizes = [1, 16, 16], strides = [1, 1, 1]} : vector<4x16x16xf32> to vector<1x16x16xf32>
    %196 = vector.shape_cast %195 : vector<1x16x16xf32> to vector<16x16xf32>
    %197 = vector.broadcast %194 : f32 to vector<16x16xf32>
    %198 = arith.mulf %196, %197 : vector<16x16xf32>
    %199 = arith.addf %174, %198 : vector<16x16xf32>
    %c34 = arith.constant 34 : index
    %200 = memref.load %arg3[%c34] : memref<36xf32, #tpu.memory_space<smem>>
    %201 = vector.extract_strided_slice %181 {offsets = [3, 0, 0], sizes = [1, 16, 16], strides = [1, 1, 1]} : vector<4x16x16xf32> to vector<1x16x16xf32>
    %202 = vector.shape_cast %201 : vector<1x16x16xf32> to vector<16x16xf32>
    %203 = vector.broadcast %200 : f32 to vector<16x16xf32>
    %204 = arith.mulf %202, %203 : vector<16x16xf32>
    %205 = arith.addf %180, %204 : vector<16x16xf32>
    %206 = vector.extract_strided_slice %1 {offsets = [0, 2, 2], sizes = [4, 16, 16], strides = [1, 1, 1]} : vector<4x18x18xf32> to vector<4x16x16xf32>
    %c8 = arith.constant 8 : index
    %207 = memref.load %arg3[%c8] : memref<36xf32, #tpu.memory_space<smem>>
    %208 = vector.extract_strided_slice %206 {offsets = [0, 0, 0], sizes = [1, 16, 16], strides = [1, 1, 1]} : vector<4x16x16xf32> to vector<1x16x16xf32>
    %209 = vector.shape_cast %208 : vector<1x16x16xf32> to vector<16x16xf32>
    %210 = vector.broadcast %207 : f32 to vector<16x16xf32>
    %211 = arith.mulf %209, %210 : vector<16x16xf32>
    %212 = arith.addf %187, %211 : vector<16x16xf32>
    %c17 = arith.constant 17 : index
    %213 = memref.load %arg3[%c17] : memref<36xf32, #tpu.memory_space<smem>>
    %214 = vector.extract_strided_slice %206 {offsets = [1, 0, 0], sizes = [1, 16, 16], strides = [1, 1, 1]} : vector<4x16x16xf32> to vector<1x16x16xf32>
    %215 = vector.shape_cast %214 : vector<1x16x16xf32> to vector<16x16xf32>
    %216 = vector.broadcast %213 : f32 to vector<16x16xf32>
    %217 = arith.mulf %215, %216 : vector<16x16xf32>
    %218 = arith.addf %193, %217 : vector<16x16xf32>
    %c26 = arith.constant 26 : index
    %219 = memref.load %arg3[%c26] : memref<36xf32, #tpu.memory_space<smem>>
    %220 = vector.extract_strided_slice %206 {offsets = [2, 0, 0], sizes = [1, 16, 16], strides = [1, 1, 1]} : vector<4x16x16xf32> to vector<1x16x16xf32>
    %221 = vector.shape_cast %220 : vector<1x16x16xf32> to vector<16x16xf32>
    %222 = vector.broadcast %219 : f32 to vector<16x16xf32>
    %223 = arith.mulf %221, %222 : vector<16x16xf32>
    %224 = arith.addf %199, %223 : vector<16x16xf32>
    %c35 = arith.constant 35 : index
    %225 = memref.load %arg3[%c35] : memref<36xf32, #tpu.memory_space<smem>>
    %226 = vector.extract_strided_slice %206 {offsets = [3, 0, 0], sizes = [1, 16, 16], strides = [1, 1, 1]} : vector<4x16x16xf32> to vector<1x16x16xf32>
    %227 = vector.shape_cast %226 : vector<1x16x16xf32> to vector<16x16xf32>
    %228 = vector.broadcast %225 : f32 to vector<16x16xf32>
    %229 = arith.mulf %227, %228 : vector<16x16xf32>
    %230 = arith.addf %205, %229 : vector<16x16xf32>
    %c0_7 = arith.constant 0 : index
    %231 = memref.load %arg4[%c0_7] : memref<32xf32, #tpu.memory_space<smem>>
    %232 = vector.broadcast %231 : f32 to vector<16x16xf32>
    %233 = arith.mulf %212, %232 : vector<16x16xf32>
    %c1_8 = arith.constant 1 : index
    %234 = memref.load %arg4[%c1_8] : memref<32xf32, #tpu.memory_space<smem>>
    %235 = vector.broadcast %234 : f32 to vector<16x16xf32>
    %236 = arith.mulf %218, %235 : vector<16x16xf32>
    %237 = arith.addf %233, %236 : vector<16x16xf32>
    %c2_9 = arith.constant 2 : index
    %238 = memref.load %arg4[%c2_9] : memref<32xf32, #tpu.memory_space<smem>>
    %239 = vector.broadcast %238 : f32 to vector<16x16xf32>
    %240 = arith.mulf %224, %239 : vector<16x16xf32>
    %241 = arith.addf %237, %240 : vector<16x16xf32>
    %c3_10 = arith.constant 3 : index
    %242 = memref.load %arg4[%c3_10] : memref<32xf32, #tpu.memory_space<smem>>
    %243 = vector.broadcast %242 : f32 to vector<16x16xf32>
    %244 = arith.mulf %230, %243 : vector<16x16xf32>
    %245 = arith.addf %241, %244 : vector<16x16xf32>
    %c0_11 = arith.constant 0 : index
    %246 = memref.load %arg5[%c0_11] : memref<8xf32, #tpu.memory_space<smem>>
    %247 = vector.broadcast %246 : f32 to vector<16x16xf32>
    %248 = arith.addf %245, %247 : vector<16x16xf32>
    %c0_12 = arith.constant 0 : index
    %c0_13 = arith.constant 0 : index
    %c0_14 = arith.constant 0 : index
    %c0_15 = arith.constant 0 : index
    %249 = vector.load %arg6[%c0_12, %c0_13, %c0_14, %c0_15] : memref<1x8x16x16xf32, #tpu.memory_space<vmem>>, vector<1x1x16x16xf32>
    %250 = vector.shape_cast %249 : vector<1x1x16x16xf32> to vector<16x16xf32>
    %251 = vector.shape_cast %248 : vector<16x16xf32> to vector<1x1x16x16xf32>
    tpu.vector_store %arg6[%c0_12, %c0_13, %c0_14, %c0_15], %251 {strides = array<i32>} : memref<1x8x16x16xf32, #tpu.memory_space<vmem>>, vector<1x1x16x16xf32>,
    %c4_16 = arith.constant 4 : index
    %252 = memref.load %arg4[%c4_16] : memref<32xf32, #tpu.memory_space<smem>>
    %253 = vector.broadcast %252 : f32 to vector<16x16xf32>
    %254 = arith.mulf %212, %253 : vector<16x16xf32>
    %c5_17 = arith.constant 5 : index
    %255 = memref.load %arg4[%c5_17] : memref<32xf32, #tpu.memory_space<smem>>
    %256 = vector.broadcast %255 : f32 to vector<16x16xf32>
    %257 = arith.mulf %218, %256 : vector<16x16xf32>
    %258 = arith.addf %254, %257 : vector<16x16xf32>
    %c6_18 = arith.constant 6 : index
    %259 = memref.load %arg4[%c6_18] : memref<32xf32, #tpu.memory_space<smem>>
    %260 = vector.broadcast %259 : f32 to vector<16x16xf32>
    %261 = arith.mulf %224, %260 : vector<16x16xf32>
    %262 = arith.addf %258, %261 : vector<16x16xf32>
    %c7_19 = arith.constant 7 : index
    %263 = memref.load %arg4[%c7_19] : memref<32xf32, #tpu.memory_space<smem>>
    %264 = vector.broadcast %263 : f32 to vector<16x16xf32>
    %265 = arith.mulf %230, %264 : vector<16x16xf32>
    %266 = arith.addf %262, %265 : vector<16x16xf32>
    %c1_20 = arith.constant 1 : index
    %267 = memref.load %arg5[%c1_20] : memref<8xf32, #tpu.memory_space<smem>>
    %268 = vector.broadcast %267 : f32 to vector<16x16xf32>
    %269 = arith.addf %266, %268 : vector<16x16xf32>
    %c0_21 = arith.constant 0 : index
    %c1_22 = arith.constant 1 : index
    %c0_23 = arith.constant 0 : index
    %c0_24 = arith.constant 0 : index
    %270 = vector.load %arg6[%c0_21, %c1_22, %c0_23, %c0_24] : memref<1x8x16x16xf32, #tpu.memory_space<vmem>>, vector<1x1x16x16xf32>
    %271 = vector.shape_cast %270 : vector<1x1x16x16xf32> to vector<16x16xf32>
    %272 = vector.shape_cast %269 : vector<16x16xf32> to vector<1x1x16x16xf32>
    tpu.vector_store %arg6[%c0_21, %c1_22, %c0_23, %c0_24], %272 {strides = array<i32>} : memref<1x8x16x16xf32, #tpu.memory_space<vmem>>, vector<1x1x16x16xf32>,
    %c8_25 = arith.constant 8 : index
    %273 = memref.load %arg4[%c8_25] : memref<32xf32, #tpu.memory_space<smem>>
    %274 = vector.broadcast %273 : f32 to vector<16x16xf32>
    %275 = arith.mulf %212, %274 : vector<16x16xf32>
    %c9_26 = arith.constant 9 : index
    %276 = memref.load %arg4[%c9_26] : memref<32xf32, #tpu.memory_space<smem>>
    %277 = vector.broadcast %276 : f32 to vector<16x16xf32>
    %278 = arith.mulf %218, %277 : vector<16x16xf32>
    %279 = arith.addf %275, %278 : vector<16x16xf32>
    %c10_27 = arith.constant 10 : index
    %280 = memref.load %arg4[%c10_27] : memref<32xf32, #tpu.memory_space<smem>>
    %281 = vector.broadcast %280 : f32 to vector<16x16xf32>
    %282 = arith.mulf %224, %281 : vector<16x16xf32>
    %283 = arith.addf %279, %282 : vector<16x16xf32>
    %c11_28 = arith.constant 11 : index
    %284 = memref.load %arg4[%c11_28] : memref<32xf32, #tpu.memory_space<smem>>
    %285 = vector.broadcast %284 : f32 to vector<16x16xf32>
    %286 = arith.mulf %230, %285 : vector<16x16xf32>
    %287 = arith.addf %283, %286 : vector<16x16xf32>
    %c2_29 = arith.constant 2 : index
    %288 = memref.load %arg5[%c2_29] : memref<8xf32, #tpu.memory_space<smem>>
    %289 = vector.broadcast %288 : f32 to vector<16x16xf32>
    %290 = arith.addf %287, %289 : vector<16x16xf32>
    %c0_30 = arith.constant 0 : index
    %c2_31 = arith.constant 2 : index
    %c0_32 = arith.constant 0 : index
    %c0_33 = arith.constant 0 : index
    %291 = vector.load %arg6[%c0_30, %c2_31, %c0_32, %c0_33] : memref<1x8x16x16xf32, #tpu.memory_space<vmem>>, vector<1x1x16x16xf32>
    %292 = vector.shape_cast %291 : vector<1x1x16x16xf32> to vector<16x16xf32>
    %293 = vector.shape_cast %290 : vector<16x16xf32> to vector<1x1x16x16xf32>
    tpu.vector_store %arg6[%c0_30, %c2_31, %c0_32, %c0_33], %293 {strides = array<i32>} : memref<1x8x16x16xf32, #tpu.memory_space<vmem>>, vector<1x1x16x16xf32>,
    %c12_34 = arith.constant 12 : index
    %294 = memref.load %arg4[%c12_34] : memref<32xf32, #tpu.memory_space<smem>>
    %295 = vector.broadcast %294 : f32 to vector<16x16xf32>
    %296 = arith.mulf %212, %295 : vector<16x16xf32>
    %c13_35 = arith.constant 13 : index
    %297 = memref.load %arg4[%c13_35] : memref<32xf32, #tpu.memory_space<smem>>
    %298 = vector.broadcast %297 : f32 to vector<16x16xf32>
    %299 = arith.mulf %218, %298 : vector<16x16xf32>
    %300 = arith.addf %296, %299 : vector<16x16xf32>
    %c14_36 = arith.constant 14 : index
    %301 = memref.load %arg4[%c14_36] : memref<32xf32, #tpu.memory_space<smem>>
    %302 = vector.broadcast %301 : f32 to vector<16x16xf32>
    %303 = arith.mulf %224, %302 : vector<16x16xf32>
    %304 = arith.addf %300, %303 : vector<16x16xf32>
    %c15_37 = arith.constant 15 : index
    %305 = memref.load %arg4[%c15_37] : memref<32xf32, #tpu.memory_space<smem>>
    %306 = vector.broadcast %305 : f32 to vector<16x16xf32>
    %307 = arith.mulf %230, %306 : vector<16x16xf32>
    %308 = arith.addf %304, %307 : vector<16x16xf32>
    %c3_38 = arith.constant 3 : index
    %309 = memref.load %arg5[%c3_38] : memref<8xf32, #tpu.memory_space<smem>>
    %310 = vector.broadcast %309 : f32 to vector<16x16xf32>
    %311 = arith.addf %308, %310 : vector<16x16xf32>
    %c0_39 = arith.constant 0 : index
    %c3_40 = arith.constant 3 : index
    %c0_41 = arith.constant 0 : index
    %c0_42 = arith.constant 0 : index
    %312 = vector.load %arg6[%c0_39, %c3_40, %c0_41, %c0_42] : memref<1x8x16x16xf32, #tpu.memory_space<vmem>>, vector<1x1x16x16xf32>
    %313 = vector.shape_cast %312 : vector<1x1x16x16xf32> to vector<16x16xf32>
    %314 = vector.shape_cast %311 : vector<16x16xf32> to vector<1x1x16x16xf32>
    tpu.vector_store %arg6[%c0_39, %c3_40, %c0_41, %c0_42], %314 {strides = array<i32>} : memref<1x8x16x16xf32, #tpu.memory_space<vmem>>, vector<1x1x16x16xf32>,
    %c16_43 = arith.constant 16 : index
    %315 = memref.load %arg4[%c16_43] : memref<32xf32, #tpu.memory_space<smem>>
    %316 = vector.broadcast %315 : f32 to vector<16x16xf32>
    %317 = arith.mulf %212, %316 : vector<16x16xf32>
    %c17_44 = arith.constant 17 : index
    %318 = memref.load %arg4[%c17_44] : memref<32xf32, #tpu.memory_space<smem>>
    %319 = vector.broadcast %318 : f32 to vector<16x16xf32>
    %320 = arith.mulf %218, %319 : vector<16x16xf32>
    %321 = arith.addf %317, %320 : vector<16x16xf32>
    %c18_45 = arith.constant 18 : index
    %322 = memref.load %arg4[%c18_45] : memref<32xf32, #tpu.memory_space<smem>>
    %323 = vector.broadcast %322 : f32 to vector<16x16xf32>
    %324 = arith.mulf %224, %323 : vector<16x16xf32>
    %325 = arith.addf %321, %324 : vector<16x16xf32>
    %c19_46 = arith.constant 19 : index
    %326 = memref.load %arg4[%c19_46] : memref<32xf32, #tpu.memory_space<smem>>
    %327 = vector.broadcast %326 : f32 to vector<16x16xf32>
    %328 = arith.mulf %230, %327 : vector<16x16xf32>
    %329 = arith.addf %325, %328 : vector<16x16xf32>
    %c4_47 = arith.constant 4 : index
    %330 = memref.load %arg5[%c4_47] : memref<8xf32, #tpu.memory_space<smem>>
    %331 = vector.broadcast %330 : f32 to vector<16x16xf32>
    %332 = arith.addf %329, %331 : vector<16x16xf32>
    %c0_48 = arith.constant 0 : index
    %c4_49 = arith.constant 4 : index
    %c0_50 = arith.constant 0 : index
    %c0_51 = arith.constant 0 : index
    %333 = vector.load %arg6[%c0_48, %c4_49, %c0_50, %c0_51] : memref<1x8x16x16xf32, #tpu.memory_space<vmem>>, vector<1x1x16x16xf32>
    %334 = vector.shape_cast %333 : vector<1x1x16x16xf32> to vector<16x16xf32>
    %335 = vector.shape_cast %332 : vector<16x16xf32> to vector<1x1x16x16xf32>
    tpu.vector_store %arg6[%c0_48, %c4_49, %c0_50, %c0_51], %335 {strides = array<i32>} : memref<1x8x16x16xf32, #tpu.memory_space<vmem>>, vector<1x1x16x16xf32>,
    %c20_52 = arith.constant 20 : index
    %336 = memref.load %arg4[%c20_52] : memref<32xf32, #tpu.memory_space<smem>>
    %337 = vector.broadcast %336 : f32 to vector<16x16xf32>
    %338 = arith.mulf %212, %337 : vector<16x16xf32>
    %c21_53 = arith.constant 21 : index
    %339 = memref.load %arg4[%c21_53] : memref<32xf32, #tpu.memory_space<smem>>
    %340 = vector.broadcast %339 : f32 to vector<16x16xf32>
    %341 = arith.mulf %218, %340 : vector<16x16xf32>
    %342 = arith.addf %338, %341 : vector<16x16xf32>
    %c22_54 = arith.constant 22 : index
    %343 = memref.load %arg4[%c22_54] : memref<32xf32, #tpu.memory_space<smem>>
    %344 = vector.broadcast %343 : f32 to vector<16x16xf32>
    %345 = arith.mulf %224, %344 : vector<16x16xf32>
    %346 = arith.addf %342, %345 : vector<16x16xf32>
    %c23_55 = arith.constant 23 : index
    %347 = memref.load %arg4[%c23_55] : memref<32xf32, #tpu.memory_space<smem>>
    %348 = vector.broadcast %347 : f32 to vector<16x16xf32>
    %349 = arith.mulf %230, %348 : vector<16x16xf32>
    %350 = arith.addf %346, %349 : vector<16x16xf32>
    %c5_56 = arith.constant 5 : index
    %351 = memref.load %arg5[%c5_56] : memref<8xf32, #tpu.memory_space<smem>>
    %352 = vector.broadcast %351 : f32 to vector<16x16xf32>
    %353 = arith.addf %350, %352 : vector<16x16xf32>
    %c0_57 = arith.constant 0 : index
    %c5_58 = arith.constant 5 : index
    %c0_59 = arith.constant 0 : index
    %c0_60 = arith.constant 0 : index
    %354 = vector.load %arg6[%c0_57, %c5_58, %c0_59, %c0_60] : memref<1x8x16x16xf32, #tpu.memory_space<vmem>>, vector<1x1x16x16xf32>
    %355 = vector.shape_cast %354 : vector<1x1x16x16xf32> to vector<16x16xf32>
    %356 = vector.shape_cast %353 : vector<16x16xf32> to vector<1x1x16x16xf32>
    tpu.vector_store %arg6[%c0_57, %c5_58, %c0_59, %c0_60], %356 {strides = array<i32>} : memref<1x8x16x16xf32, #tpu.memory_space<vmem>>, vector<1x1x16x16xf32>,
    %c24_61 = arith.constant 24 : index
    %357 = memref.load %arg4[%c24_61] : memref<32xf32, #tpu.memory_space<smem>>
    %358 = vector.broadcast %357 : f32 to vector<16x16xf32>
    %359 = arith.mulf %212, %358 : vector<16x16xf32>
    %c25_62 = arith.constant 25 : index
    %360 = memref.load %arg4[%c25_62] : memref<32xf32, #tpu.memory_space<smem>>
    %361 = vector.broadcast %360 : f32 to vector<16x16xf32>
    %362 = arith.mulf %218, %361 : vector<16x16xf32>
    %363 = arith.addf %359, %362 : vector<16x16xf32>
    %c26_63 = arith.constant 26 : index
    %364 = memref.load %arg4[%c26_63] : memref<32xf32, #tpu.memory_space<smem>>
    %365 = vector.broadcast %364 : f32 to vector<16x16xf32>
    %366 = arith.mulf %224, %365 : vector<16x16xf32>
    %367 = arith.addf %363, %366 : vector<16x16xf32>
    %c27_64 = arith.constant 27 : index
    %368 = memref.load %arg4[%c27_64] : memref<32xf32, #tpu.memory_space<smem>>
    %369 = vector.broadcast %368 : f32 to vector<16x16xf32>
    %370 = arith.mulf %230, %369 : vector<16x16xf32>
    %371 = arith.addf %367, %370 : vector<16x16xf32>
    %c6_65 = arith.constant 6 : index
    %372 = memref.load %arg5[%c6_65] : memref<8xf32, #tpu.memory_space<smem>>
    %373 = vector.broadcast %372 : f32 to vector<16x16xf32>
    %374 = arith.addf %371, %373 : vector<16x16xf32>
    %c0_66 = arith.constant 0 : index
    %c6_67 = arith.constant 6 : index
    %c0_68 = arith.constant 0 : index
    %c0_69 = arith.constant 0 : index
    %375 = vector.load %arg6[%c0_66, %c6_67, %c0_68, %c0_69] : memref<1x8x16x16xf32, #tpu.memory_space<vmem>>, vector<1x1x16x16xf32>
    %376 = vector.shape_cast %375 : vector<1x1x16x16xf32> to vector<16x16xf32>
    %377 = vector.shape_cast %374 : vector<16x16xf32> to vector<1x1x16x16xf32>
    tpu.vector_store %arg6[%c0_66, %c6_67, %c0_68, %c0_69], %377 {strides = array<i32>} : memref<1x8x16x16xf32, #tpu.memory_space<vmem>>, vector<1x1x16x16xf32>,
    %c28_70 = arith.constant 28 : index
    %378 = memref.load %arg4[%c28_70] : memref<32xf32, #tpu.memory_space<smem>>
    %379 = vector.broadcast %378 : f32 to vector<16x16xf32>
    %380 = arith.mulf %212, %379 : vector<16x16xf32>
    %c29_71 = arith.constant 29 : index
    %381 = memref.load %arg4[%c29_71] : memref<32xf32, #tpu.memory_space<smem>>
    %382 = vector.broadcast %381 : f32 to vector<16x16xf32>
    %383 = arith.mulf %218, %382 : vector<16x16xf32>
    %384 = arith.addf %380, %383 : vector<16x16xf32>
    %c30_72 = arith.constant 30 : index
    %385 = memref.load %arg4[%c30_72] : memref<32xf32, #tpu.memory_space<smem>>
    %386 = vector.broadcast %385 : f32 to vector<16x16xf32>
    %387 = arith.mulf %224, %386 : vector<16x16xf32>
    %388 = arith.addf %384, %387 : vector<16x16xf32>
    %c31_73 = arith.constant 31 : index
    %389 = memref.load %arg4[%c31_73] : memref<32xf32, #tpu.memory_space<smem>>
    %390 = vector.broadcast %389 : f32 to vector<16x16xf32>
    %391 = arith.mulf %230, %390 : vector<16x16xf32>
    %392 = arith.addf %388, %391 : vector<16x16xf32>
    %c7_74 = arith.constant 7 : index
    %393 = memref.load %arg5[%c7_74] : memref<8xf32, #tpu.memory_space<smem>>
    %394 = vector.broadcast %393 : f32 to vector<16x16xf32>
    %395 = arith.addf %392, %394 : vector<16x16xf32>
    %c0_75 = arith.constant 0 : index
    %c7_76 = arith.constant 7 : index
    %c0_77 = arith.constant 0 : index
    %c0_78 = arith.constant 0 : index
    %396 = vector.load %arg6[%c0_75, %c7_76, %c0_77, %c0_78] : memref<1x8x16x16xf32, #tpu.memory_space<vmem>>, vector<1x1x16x16xf32>
    %397 = vector.shape_cast %396 : vector<1x1x16x16xf32> to vector<16x16xf32>
    %398 = vector.shape_cast %395 : vector<16x16xf32> to vector<1x1x16x16xf32>
    tpu.vector_store %arg6[%c0_75, %c7_76, %c0_77, %c0_78], %398 {strides = array<i32>} : memref<1x8x16x16xf32, #tpu.memory_space<vmem>>, vector<1x1x16x16xf32>,
    return
  }
  func.func @transform_0(%arg0: i32, %arg1: i32) -> (i32, i32, i32, i32) {
    %c0_i32 = arith.constant 0 : i32
    %c0_i32_0 = arith.constant 0 : i32
    %c0_i32_1 = arith.constant 0 : i32
    return %arg0, %c0_i32, %arg1, %c0_i32_0 : i32, i32, i32, i32
  }
  func.func @transform_1(%arg0: i32, %arg1: i32) -> i32 {
    %c0_i32 = arith.constant 0 : i32
    %c0_i32_0 = arith.constant 0 : i32
    return %c0_i32 : i32
  }
  func.func @transform_2(%arg0: i32, %arg1: i32) -> i32 {
    %c0_i32 = arith.constant 0 : i32
    %c0_i32_0 = arith.constant 0 : i32
    return %c0_i32 : i32
  }
  func.func @transform_3(%arg0: i32, %arg1: i32) -> i32 {
    %c0_i32 = arith.constant 0 : i32
    %c0_i32_0 = arith.constant 0 : i32
    return %c0_i32 : i32
  }
  func.func @transform_4(%arg0: i32, %arg1: i32) -> (i32, i32, i32, i32) {
    %c0_i32 = arith.constant 0 : i32
    %c0_i32_0 = arith.constant 0 : i32
    %c0_i32_1 = arith.constant 0 : i32
    return %arg0, %c0_i32, %arg1, %c0_i32_0 : i32, i32, i32, i32
  }
}

</mosaic_0001>

<llo_original>
// kernel: tpu_custom_call.1
$region0: #{tpu_custom_call.1}
  #allocation0 [shape = 'u32[]', space=smem, size = 0x4, offset = 0x4, fixed_abs, tag = 'smem constant byte address 0x4 - core index']
  #allocation1 [shape = 'u32[144,128]{1,0:T(1,128)}', space=vmem, size = 0x12000, scoped, tag = 'internal scratch']
  %s0 = inlined_call_operand.vmem [shape: f32[2,4,18,18], index: 0, kind: input, shape index: {}]
  %s1 = inlined_call_operand.vmem [shape: f32[36], index: 1, kind: input, shape index: {}]
  %s2 = inlined_call_operand.vmem [shape: f32[32], index: 2, kind: input, shape index: {}]
  %s3 = inlined_call_operand.vmem [shape: f32[8], index: 3, kind: input, shape index: {}]
  %s4 = inlined_call_operand.hbm [shape: f32[2,8,16,16], index: 4, kind: output, shape index: {}]
  %s5 = sld [smem:[#allocation0]]
  $region61: #{tpu_custom_call.1} parent=0
    _
  %s7 = ssub.s32 1, %s5
  %s8 = scalar_select 0, %s7, %s5
  $region1: #{tpu_custom_call.1} parent=0
    #allocation2 [shape = 'u8[512]{0}', space=smem, size = 0x200, scoped, tag = 'input window, operand 1, single buffered']
    #allocation3 [shape = 's32[2]{0}', space=sflag, size = 0x8, scoped, tag = 'scoped memory for tpu_custom_call.1']
    #allocation4 [shape = 's32[2]{0}', space=sflag, size = 0x8, scoped, tag = 'scoped memory for tpu_custom_call.1']
    #allocation5 [shape = 'u8[512]{0}', space=smem, size = 0x200, scoped, tag = 'input window, operand 2, single buffered']
    #allocation6 [shape = 's32[1]{0}', space=sflag, size = 0x4, scoped, tag = 'scoped memory for tpu_custom_call.1']
    #allocation7 [shape = 'u8[512]{0}', space=smem, size = 0x200, scoped, tag = 'input window, operand 3, single buffered']
    #allocation8 [shape = 'u8[131072]{0}', space=vmem, size = 0x20000, scoped, tag = 'output window, operand 0']
    %9 = vsyncpa [#allocation4], 0
    %10 = vsyncpa [#allocation6], 0
    %11 = vsyncpa [#allocation3], 0
    %s12 = scalar_lea.sflag [#allocation3], 1
    %13 = vsyncpa %s12, 0
    loop: start=0, step=1, limit=4
    $region2: #{tpu_custom_call.1} parent=1 // loop_pre_header
      _
    $region3: #{tpu_custom_call.1} parent=1 // loop_header
      %s15 = sphi 0, %s19
      %p16 = scmp.ge.s32.totalorder %s15, 4
      %s22 = sphi 0, %s34
      %s23 = sphi 0, %s30
      %s24 = sphi 0, %s22
      %s25 = sphi 0, %s23
      %s26 = sphi 0, %s24
      %s27 = sphi 0, %s25
      %s39 = sphi 0, %s41
      %s42 = sphi 0, %s39
      %s43 = sphi 0, %s42
      %s59 = sphi 0, %s43
      %s63 = sphi 0, %s63
      %s65 = sphi 0, %s63
      %s66 = sphi 0, %s65
      %s80 = sphi 0, %s66
      %s84 = sphi 0, %s84
      %s86 = sphi 0, %s84
      %s87 = sphi 0, %s86
      %s101 = sphi 0, %s87
      %s105 = sphi 0, %s105
      %s107 = sphi 0, %s105
      %s108 = sphi 0, %s107
      %s122 = sphi 0, %s108
      %s130 = sphi 0, %s132
      %s133 = sphi 0, %s130
      %s134 = sphi 0, %s133
      %s150 = sphi 0, %s134
    $region4: #{tpu_custom_call.1} parent=1 // loop_header_branch
      %18 = sbr.rel (%p16) target = $region8
    $region5: #{tpu_custom_call.1} parent=1 // loop_body
      %s20 = ssub.s32 %s15, 1
      %s21 = ssub.s32 %s15, 2
      %s28 = sadd.s32 1, %s23
      %p29 = scmp.ge.s32.totalorder %s28, 1
      %s30 = scalar_select %p29, 0, %s28
      %s31 = sadd.s32 1, %s22
      %s32 = scalar_select %p29, %s31, %s22
      %p33 = scmp.ge.s32.totalorder %s32, 2
      %s34 = scalar_select %p33, 0, %s32
      %s35 = ssub.s32 %s22, %s34
      %s36 = ssub.s32 %s23, %s30
      %s37 = sor.u32 %s35, %s36
      %p38 = scmp.eq.s32.totalorder %s37, 0
      %s40 = sadd.s32 %s39, 1
      %s41 = scalar_select %p38, %s39, %s40
      %p44 = pneg %p38
      %p45 = scmp.eq.s32.totalorder %s15, 1
      %p46 = por %p44, %p45
      %p47 = scmp.ne.s32.totalorder %s39, %s42
      %p48 = scmp.eq.s32.totalorder %s15, 0
      %p49 = por %p47, %p48
      %p50 = scmp.ne.s32.totalorder %s39, %s42
      %p51 = scmp.eq.s32.totalorder %s20, 1
      %p52 = por %p50, %p51
      %p53 = scmp.ne.s32.totalorder %s42, %s43
      %p54 = scmp.eq.s32.totalorder %s20, 0
      %p55 = por %p53, %p54
      %p56 = scmp.ne.s32.totalorder %s42, %s43
      %p57 = scmp.eq.s32.totalorder %s21, 1
      %p58 = por %p56, %p57
      %p60 = scmp.ne.s32.totalorder %s43, %s59
      %p61 = scmp.eq.s32.totalorder %s21, 0
      %p62 = por %p60, %p61
      %s64 = sadd.s32 %s63, 1
      %p67 = scmp.eq.s32.totalorder %s15, 1
      %p68 = scmp.ne.s32.totalorder %s63, %s65
      %p69 = scmp.eq.s32.totalorder %s15, 0
      %p70 = por %p68, %p69
      %p71 = scmp.ne.s32.totalorder %s63, %s65
      %p72 = scmp.eq.s32.totalorder %s20, 1
      %p73 = por %p71, %p72
      %p74 = scmp.ne.s32.totalorder %s65, %s66
      %p75 = scmp.eq.s32.totalorder %s20, 0
      %p76 = por %p74, %p75
      %p77 = scmp.ne.s32.totalorder %s65, %s66
      %p78 = scmp.eq.s32.totalorder %s21, 1
      %p79 = por %p77, %p78
      %p81 = scmp.ne.s32.totalorder %s66, %s80
      %p82 = scmp.eq.s32.totalorder %s21, 0
      %p83 = por %p81, %p82
      %s85 = sadd.s32 %s84, 1
      %p88 = scmp.eq.s32.totalorder %s15, 1
      %p89 = scmp.ne.s32.totalorder %s84, %s86
      %p90 = scmp.eq.s32.totalorder %s15, 0
      %p91 = por %p89, %p90
      %p92 = scmp.ne.s32.totalorder %s84, %s86
      %p93 = scmp.eq.s32.totalorder %s20, 1
      %p94 = por %p92, %p93
      %p95 = scmp.ne.s32.totalorder %s86, %s87
      %p96 = scmp.eq.s32.totalorder %s20, 0
      %p97 = por %p95, %p96
      %p98 = scmp.ne.s32.totalorder %s86, %s87
      %p99 = scmp.eq.s32.totalorder %s21, 1
      %p100 = por %p98, %p99
      %p102 = scmp.ne.s32.totalorder %s87, %s101
      %p103 = scmp.eq.s32.totalorder %s21, 0
      %p104 = por %p102, %p103
      %s106 = sadd.s32 %s105, 1
      %p109 = scmp.eq.s32.totalorder %s15, 1
      %p110 = scmp.ne.s32.totalorder %s105, %s107
      %p111 = scmp.eq.s32.totalorder %s15, 0
      %p112 = por %p110, %p111
      %p113 = scmp.ne.s32.totalorder %s105, %s107
      %p114 = scmp.eq.s32.totalorder %s20, 1
      %p115 = por %p113, %p114
      %p116 = scmp.ne.s32.totalorder %s107, %s108
      %p117 = scmp.eq.s32.totalorder %s20, 0
      %p118 = por %p116, %p117
      %p119 = scmp.ne.s32.totalorder %s107, %s108
      %p120 = scmp.eq.s32.totalorder %s21, 1
      %p121 = por %p119, %p120
      %p123 = scmp.ne.s32.totalorder %s108, %s122
      %p124 = scmp.eq.s32.totalorder %s21, 0
      %p125 = por %p123, %p124
      %s126 = ssub.s32 %s22, %s34
      %s127 = ssub.s32 %s23, %s30
      %s128 = sor.u32 %s126, %s127
      %p129 = scmp.eq.s32.totalorder %s128, 0
      %s131 = sadd.s32 %s130, 1
      %s132 = scalar_select %p129, %s130, %s131
      %p135 = pneg %p129
      %p136 = scmp.eq.s32.totalorder %s15, 1
      %p137 = por %p135, %p136
      %p138 = scmp.ne.s32.totalorder %s130, %s133
      %p139 = scmp.eq.s32.totalorder %s15, 0
      %p140 = por %p138, %p139
      %p141 = scmp.ne.s32.totalorder %s130, %s133
      %p142 = scmp.eq.s32.totalorder %s20, 1
      %p143 = por %p141, %p142
      %p144 = scmp.ne.s32.totalorder %s133, %s134
      %p145 = scmp.eq.s32.totalorder %s20, 0
      %p146 = por %p144, %p145
      %p147 = scmp.ne.s32.totalorder %s133, %s134
      %p148 = scmp.eq.s32.totalorder %s21, 1
      %p149 = por %p147, %p148
      %p151 = scmp.ne.s32.totalorder %s134, %s150
      %p152 = scmp.eq.s32.totalorder %s21, 0
      %p153 = por %p151, %p152
      %p154 = scmp.le.s32.totalorder 1, %s15
      %p155 = scmp.lt.s32.totalorder %s15, 3
      %p156 = pnand %p154, %p155
      %p157 = pneg %p156
      // Predicated region
      $region9: #{tpu_custom_call.1} parent=5 // pred_check
        _
      $region10: #{tpu_custom_call.1} parent=5 // pred_check_branch
        %159 = sbr.rel (%p156) target = $region12
      $region11: #{tpu_custom_call.1} parent=5 // pred_region
        %s160 = ssub.s32 %s15, 1
        // Predicated region
        $region13: #{tpu_custom_call.1} parent=11 // pred_check
          %p161 = pneg %p76
        $region14: #{tpu_custom_call.1} parent=11 // pred_check_branch
          %163 = sbr.rel (%p161) target = $region16
        $region15: #{tpu_custom_call.1} parent=11 // pred_region
          %s165 = ssub.s32 16, 16
          %166 = vsyncadd [#allocation4], %s165
          %s168 = sshll.u32 %s1, 4
          %s169 = int_to_ptr.vmem [resolvable:$true] %s168
          %171 = dma.vmem_to_smem %s169, 16, [#allocation2], [#allocation4]
        $region16: #{tpu_custom_call.1} parent=11 // pred_fallthru
          _
        // Predicated region
        $region17: #{tpu_custom_call.1} parent=11 // pred_check
          %p172 = pneg %p97
        $region18: #{tpu_custom_call.1} parent=11 // pred_check_branch
          %174 = sbr.rel (%p172) target = $region20
        $region19: #{tpu_custom_call.1} parent=11 // pred_region
          %s176 = ssub.s32 16, 16
          %177 = vsyncadd [#allocation6], %s176
          %s179 = sshll.u32 %s2, 4
          %s180 = int_to_ptr.vmem [resolvable:$true] %s179
          %182 = dma.vmem_to_smem %s180, 16, [#allocation5], [#allocation6]
        $region20: #{tpu_custom_call.1} parent=11 // pred_fallthru
          _
        // Predicated region
        $region21: #{tpu_custom_call.1} parent=11 // pred_check
          %p183 = pneg %p118
        $region22: #{tpu_custom_call.1} parent=11 // pred_check_branch
          %185 = sbr.rel (%p183) target = $region24
        $region23: #{tpu_custom_call.1} parent=11 // pred_region
          %s187 = ssub.s32 16, 16
          %188 = vsyncadd [#allocation6], %s187
          %s190 = sshll.u32 %s3, 4
          %s191 = int_to_ptr.vmem [resolvable:$true] %s190
          %193 = dma.vmem_to_smem %s191, 16, [#allocation7], [#allocation6]
        $region24: #{tpu_custom_call.1} parent=11 // pred_fallthru
          _
      $region12: #{tpu_custom_call.1} parent=5 // pred_fallthru
        _
      %p194 = scmp.lt.s32.totalorder %s15, 2
      // Predicated region
      $region25: #{tpu_custom_call.1} parent=5 // pred_check
        %p195 = pneg %p194
      $region26: #{tpu_custom_call.1} parent=5 // pred_check_branch
        %197 = sbr.rel (%p195) target = $region28
      $region27: #{tpu_custom_call.1} parent=5 // pred_region
        // Predicated region
        $region29: #{tpu_custom_call.1} parent=27 // pred_check
          %p198 = pneg %p49
        $region30: #{tpu_custom_call.1} parent=27 // pred_check_branch
          %200 = sbr.rel (%p198) target = $region32
        $region31: #{tpu_custom_call.1} parent=27 // pred_region
          %s201 = smul.u32 3, %s23
          %p202 = scmp.lt.s32.totalorder %s22, 1
          %s203 = scalar_select %p202, %s22, 1
          %p204 = scmp.lt.s32.totalorder %s201, 2
          %s205 = scalar_select %p204, %s201, 2
          %s206 = smul.addr %s203, 12
          %s207 = sadd.s32 %s205, %s206
          %s208 = smul.addr %s207, 8
          %s209 = scalar_lea.vmem %s0, %s208
          %s210 = smul.u32 3, %s23
        $region32: #{tpu_custom_call.1} parent=27 // pred_fallthru
          _
      $region28: #{tpu_custom_call.1} parent=5 // pred_fallthru
        _
      %p211 = scmp.le.s32.totalorder 1, %s15
      %p212 = scmp.lt.s32.totalorder %s15, 3
      %p213 = pnand %p211, %p212
      %p214 = pneg %p213
      // Predicated region
      $region33: #{tpu_custom_call.1} parent=5 // pred_check
        _
      $region34: #{tpu_custom_call.1} parent=5 // pred_check_branch
        %216 = sbr.rel (%p213) target = $region36
      $region35: #{tpu_custom_call.1} parent=5 // pred_region
        %s217 = ssub.s32 %s15, 1
        // Predicated region
        $region37: #{tpu_custom_call.1} parent=35 // pred_check
          %p218 = pneg %p76
        $region38: #{tpu_custom_call.1} parent=35 // pred_check_branch
          %220 = sbr.rel (%p218) target = $region40
        $region39: #{tpu_custom_call.1} parent=35 // pred_region
          %221 = dma.done [#allocation4], 16
        $region40: #{tpu_custom_call.1} parent=35 // pred_fallthru
          _
        // Predicated region
        $region41: #{tpu_custom_call.1} parent=35 // pred_check
          %p222 = pneg %p97
        $region42: #{tpu_custom_call.1} parent=35 // pred_check_branch
          %224 = sbr.rel (%p222) target = $region44
        $region43: #{tpu_custom_call.1} parent=35 // pred_region
          %225 = dma.done [#allocation6], 16
        $region44: #{tpu_custom_call.1} parent=35 // pred_fallthru
          _
        // Predicated region
        $region45: #{tpu_custom_call.1} parent=35 // pred_check
          %p226 = pneg %p118
        $region46: #{tpu_custom_call.1} parent=35 // pred_check_branch
          %228 = sbr.rel (%p226) target = $region48
        $region47: #{tpu_custom_call.1} parent=35 // pred_region
          %229 = dma.done [#allocation6], 16
        $region48: #{tpu_custom_call.1} parent=35 // pred_fallthru
          _
        %230 = sfence
        %s231 = smul.u32 3, %s25
        %p232 = scmp.lt.s32.totalorder %s24, 1
        %s233 = scalar_select %p232, %s24, 1
        %p234 = scmp.lt.s32.totalorder %s231, 2
        %s235 = scalar_select %p234, %s231, 2
        %s236 = smul.addr %s233, 12
        %s237 = sadd.s32 %s235, %s236
        %s238 = smul.addr %s237, 8
        %s239 = scalar_lea.vmem %s0, %s238
        %p240 = pneg %p55
        %p241 = pneg %p52
        %p242 = pneg %p76
        %p243 = pneg %p73
        %p244 = pneg %p97
        %p245 = pneg %p94
        %p246 = pneg %p118
        %p247 = pneg %p115
        %p248 = pneg %p146
        %p249 = pneg %p143
        %s250 = sand.u32 %s133, 1
        %s251 = scalar_lea.sflag [#allocation3], %s250
        %s252 = sand.u32 %s133, 1
        %s253 = smul.addr %s252, 128
        %s254 = scalar_lea.vmem [#allocation8], %s253
        %s255 = smul.u32 3, %s25
        %p256 = scmp.lt.s32.totalorder %s24, 1
        %s257 = scalar_select %p256, %s24, 1
        %p258 = scmp.lt.s32.totalorder %s255, 2
        %s259 = scalar_select %p258, %s255, 2
        %s260 = smul.addr %s257, 12
        %s261 = sadd.s32 %s259, %s260
        %s262 = smul.addr %s261, 8
        %s263 = scalar_lea.vmem %s0, %s262
        %s264 = smul.u32 3, %s25
        %s265 = smul.u32 2, %s25
        %v266 = vld [vmem:[%s263] sm:$0xff]
        %v267 = vld [vmem:[%s263 + $0x8] sm:$0xff]
        %v268 = vld [vmem:[%s263 + $0x10] sm:$0x3]
        %v269 = vld [vmem:[%s263 + $0x18] sm:$0xff]
        %v270 = vld [vmem:[%s263 + $0x20] sm:$0xff]
        %v271 = vld [vmem:[%s263 + $0x28] sm:$0x3]
        %v272 = vld [vmem:[%s263 + $0x30] sm:$0xff]
        %v273 = vld [vmem:[%s263 + $0x38] sm:$0xff]
        %v274 = vld [vmem:[%s263 + $0x40] sm:$0x3]
        %v275 = vld [vmem:[%s263 + $0x48] sm:$0xff]
        %v276 = vld [vmem:[%s263 + $0x50] sm:$0xff]
        %v277 = vld [vmem:[%s263 + $0x58] sm:$0x3]
        %s278 = sld [smem:[#allocation2]]
        %v279 = vstv %s278
        %v280 = vmul.f32 %v266, %v279
        %v281 = vmul.f32 %v267, %v279
        %v282 = vadd.f32 %v280, 0.0
        %v283 = vadd.f32 %v281, 0.0
        %s284 = sld [smem:[#allocation2 + $0x9]]
        %v285 = vstv %s284
        %v286 = vmul.f32 %v269, %v285
        %v287 = vmul.f32 %v270, %v285
        %v288 = vadd.f32 %v286, 0.0
        %v289 = vadd.f32 %v287, 0.0
        %s290 = sld [smem:[#allocation2 + $0x12]]
        %v291 = vstv %s290
        %v292 = vmul.f32 %v272, %v291
        %v293 = vmul.f32 %v273, %v291
        %v294 = vadd.f32 %v292, 0.0
        %v295 = vadd.f32 %v293, 0.0
        %s296 = sld [smem:[#allocation2 + $0x1b]]
        %v297 = vstv %s296
        %v298 = vmul.f32 %v275, %v297
        %v299 = vmul.f32 %v276, %v297
        %v300 = vadd.f32 %v298, 0.0
        %v301 = vadd.f32 %v299, 0.0
        %s302 = sld [smem:[#allocation2 + $0x1]]
        %v303 = vstv %s302
        %v304 = vmul.f32 %v266, %v303
        %v305 = vmul.f32 %v267, %v303
        %308 = vrot.lane.b32.xlu0 %v304, 127
        %v309 = vpop.permute.xlu0 %308
        %310 = vrot.lane.b32.xlu0 %v305, 127
        %v311 = vpop.permute.xlu0 %310
        %v314 = vadd.f32 %v282, %v309
        %v315 = vadd.f32 %v283, %v311
        %s316 = sld [smem:[#allocation2 + $0xa]]
        %v317 = vstv %s316
        %v318 = vmul.f32 %v269, %v317
        %v319 = vmul.f32 %v270, %v317
        %322 = vrot.lane.b32.xlu0 %v318, 127
        %v323 = vpop.permute.xlu0 %322
        %324 = vrot.lane.b32.xlu0 %v319, 127
        %v325 = vpop.permute.xlu0 %324
        %v328 = vadd.f32 %v288, %v323
        %v329 = vadd.f32 %v289, %v325
        %s330 = sld [smem:[#allocation2 + $0x13]]
        %v331 = vstv %s330
        %v332 = vmul.f32 %v272, %v331
        %v333 = vmul.f32 %v273, %v331
        %336 = vrot.lane.b32.xlu0 %v332, 127
        %v337 = vpop.permute.xlu0 %336
        %338 = vrot.lane.b32.xlu0 %v333, 127
        %v339 = vpop.permute.xlu0 %338
        %v342 = vadd.f32 %v294, %v337
        %v343 = vadd.f32 %v295, %v339
        %s344 = sld [smem:[#allocation2 + $0x1c]]
        %v345 = vstv %s344
        %v346 = vmul.f32 %v275, %v345
        %v347 = vmul.f32 %v276, %v345
        %350 = vrot.lane.b32.xlu0 %v346, 127
        %v351 = vpop.permute.xlu0 %350
        %352 = vrot.lane.b32.xlu0 %v347, 127
        %v353 = vpop.permute.xlu0 %352
        %v356 = vadd.f32 %v300, %v351
        %v357 = vadd.f32 %v301, %v353
        %s358 = sld [smem:[#allocation2 + $0x2]]
        %v359 = vstv %s358
        %v360 = vmul.f32 %v266, %v359
        %v361 = vmul.f32 %v267, %v359
        %364 = vrot.lane.b32.xlu0 %v360, 126
        %v365 = vpop.permute.xlu0 %364
        %366 = vrot.lane.b32.xlu0 %v361, 126
        %v367 = vpop.permute.xlu0 %366
        %v370 = vadd.f32 %v314, %v365
        %v371 = vadd.f32 %v315, %v367
        %s372 = sld [smem:[#allocation2 + $0xb]]
        %v373 = vstv %s372
        %v374 = vmul.f32 %v269, %v373
        %v375 = vmul.f32 %v270, %v373
        %378 = vrot.lane.b32.xlu0 %v374, 126
        %v379 = vpop.permute.xlu0 %378
        %380 = vrot.lane.b32.xlu0 %v375, 126
        %v381 = vpop.permute.xlu0 %380
        %v384 = vadd.f32 %v328, %v379
        %v385 = vadd.f32 %v329, %v381
        %s386 = sld [smem:[#allocation2 + $0x14]]
        %v387 = vstv %s386
        %v388 = vmul.f32 %v272, %v387
        %v389 = vmul.f32 %v273, %v387
        %392 = vrot.lane.b32.xlu0 %v388, 126
        %v393 = vpop.permute.xlu0 %392
        %394 = vrot.lane.b32.xlu0 %v389, 126
        %v395 = vpop.permute.xlu0 %394
        %v398 = vadd.f32 %v342, %v393
        %v399 = vadd.f32 %v343, %v395
        %s400 = sld [smem:[#allocation2 + $0x1d]]
        %v401 = vstv %s400
        %v402 = vmul.f32 %v275, %v401
        %v403 = vmul.f32 %v276, %v401
        %406 = vrot.lane.b32.xlu0 %v402, 126
        %v407 = vpop.permute.xlu0 %406
        %408 = vrot.lane.b32.xlu0 %v403, 126
        %v409 = vpop.permute.xlu0 %408
        %v412 = vadd.f32 %v356, %v407
        %v413 = vadd.f32 %v357, %v409
        %s414 = sld [smem:[#allocation2 + $0x3]]
        %v415 = vstv %s414
        %v416 = vmul.f32 %v266, %v415
        %v417 = vmul.f32 %v267, %v415
        %v418 = vmul.f32 %v268, %v415
        %vm422 = vcmask 1046528
        %v423 = vrot.slane %v416, 1
        %v424 = vrot.slane %v417, 1
        %v425 = vsel %vm422, %v423, %v424
        %v426 = vrot.slane %v418, 1
        %v427 = vsel %vm422, %v424, %v426
        %v430 = vadd.f32 %v370, %v425
        %v431 = vadd.f32 %v371, %v427
        %s432 = sld [smem:[#allocation2 + $0xc]]
        %v433 = vstv %s432
        %v434 = vmul.f32 %v269, %v433
        %v435 = vmul.f32 %v270, %v433
        %v436 = vmul.f32 %v271, %v433
        %v440 = vrot.slane %v434, 1
        %v441 = vrot.slane %v435, 1
        %v442 = vsel %vm422, %v440, %v441
        %v443 = vrot.slane %v436, 1
        %v444 = vsel %vm422, %v441, %v443
        %v447 = vadd.f32 %v384, %v442
        %v448 = vadd.f32 %v385, %v444
        %s449 = sld [smem:[#allocation2 + $0x15]]
        %v450 = vstv %s449
        %v451 = vmul.f32 %v272, %v450
        %v452 = vmul.f32 %v273, %v450
        %v453 = vmul.f32 %v274, %v450
        %v457 = vrot.slane %v451, 1
        %v458 = vrot.slane %v452, 1
        %v459 = vsel %vm422, %v457, %v458
        %v460 = vrot.slane %v453, 1
        %v461 = vsel %vm422, %v458, %v460
        %v464 = vadd.f32 %v398, %v459
        %v465 = vadd.f32 %v399, %v461
        %s466 = sld [smem:[#allocation2 + $0x1e]]
        %v467 = vstv %s466
        %v468 = vmul.f32 %v275, %v467
        %v469 = vmul.f32 %v276, %v467
        %v470 = vmul.f32 %v277, %v467
        %v474 = vrot.slane %v468, 1
        %v475 = vrot.slane %v469, 1
        %v476 = vsel %vm422, %v474, %v475
        %v477 = vrot.slane %v470, 1
        %v478 = vsel %vm422, %v475, %v477
        %v481 = vadd.f32 %v412, %v476
        %v482 = vadd.f32 %v413, %v478
        %s483 = sld [smem:[#allocation2 + $0x4]]
        %v484 = vstv %s483
        %v485 = vmul.f32 %v266, %v484
        %v486 = vmul.f32 %v267, %v484
        %v487 = vmul.f32 %v268, %v484
        %v491 = vrot.slane %v485, 1
        %v492 = vrot.slane %v486, 1
        %v493 = vsel %vm422, %v491, %v492
        %v494 = vrot.slane %v487, 1
        %v495 = vsel %vm422, %v492, %v494
        %496 = vrot.lane.b32.xlu0 %v493, 127
        %v497 = vpop.permute.xlu0 %496
        %498 = vrot.lane.b32.xlu0 %v495, 127
        %v499 = vpop.permute.xlu0 %498
        %v502 = vadd.f32 %v430, %v497
        %v503 = vadd.f32 %v431, %v499
        %s504 = sld [smem:[#allocation2 + $0xd]]
        %v505 = vstv %s504
        %v506 = vmul.f32 %v269, %v505
        %v507 = vmul.f32 %v270, %v505
        %v508 = vmul.f32 %v271, %v505
        %v512 = vrot.slane %v506, 1
        %v513 = vrot.slane %v507, 1
        %v514 = vsel %vm422, %v512, %v513
        %v515 = vrot.slane %v508, 1
        %v516 = vsel %vm422, %v513, %v515
        %517 = vrot.lane.b32.xlu0 %v514, 127
        %v518 = vpop.permute.xlu0 %517
        %519 = vrot.lane.b32.xlu0 %v516, 127
        %v520 = vpop.permute.xlu0 %519
        %v523 = vadd.f32 %v447, %v518
        %v524 = vadd.f32 %v448, %v520
        %s525 = sld [smem:[#allocation2 + $0x16]]
        %v526 = vstv %s525
        %v527 = vmul.f32 %v272, %v526
        %v528 = vmul.f32 %v273, %v526
        %v529 = vmul.f32 %v274, %v526
        %v533 = vrot.slane %v527, 1
        %v534 = vrot.slane %v528, 1
        %v535 = vsel %vm422, %v533, %v534
        %v536 = vrot.slane %v529, 1
        %v537 = vsel %vm422, %v534, %v536
        %538 = vrot.lane.b32.xlu0 %v535, 127
        %v539 = vpop.permute.xlu0 %538
        %540 = vrot.lane.b32.xlu0 %v537, 127
        %v541 = vpop.permute.xlu0 %540
        %v544 = vadd.f32 %v464, %v539
        %v545 = vadd.f32 %v465, %v541
        %s546 = sld [smem:[#allocation2 + $0x1f]]
        %v547 = vstv %s546
        %v548 = vmul.f32 %v275, %v547
        %v549 = vmul.f32 %v276, %v547
        %v550 = vmul.f32 %v277, %v547
        %v554 = vrot.slane %v548, 1
        %v555 = vrot.slane %v549, 1
        %v556 = vsel %vm422, %v554, %v555
        %v557 = vrot.slane %v550, 1
        %v558 = vsel %vm422, %v555, %v557
        %559 = vrot.lane.b32.xlu0 %v556, 127
        %v560 = vpop.permute.xlu0 %559
        %561 = vrot.lane.b32.xlu0 %v558, 127
        %v562 = vpop.permute.xlu0 %561
        %v565 = vadd.f32 %v481, %v560
        %v566 = vadd.f32 %v482, %v562
        %s567 = sld [smem:[#allocation2 + $0x5]]
        %v568 = vstv %s567
        %v569 = vmul.f32 %v266, %v568
        %v570 = vmul.f32 %v267, %v568
        %v571 = vmul.f32 %v268, %v568
        %v575 = vrot.slane %v569, 1
        %v576 = vrot.slane %v570, 1
        %v577 = vsel %vm422, %v575, %v576
        %v578 = vrot.slane %v571, 1
        %v579 = vsel %vm422, %v576, %v578
        %580 = vrot.lane.b32.xlu0 %v577, 126
        %v581 = vpop.permute.xlu0 %580
        %582 = vrot.lane.b32.xlu0 %v579, 126
        %v583 = vpop.permute.xlu0 %582
        %v586 = vadd.f32 %v502, %v581
        %v587 = vadd.f32 %v503, %v583
        %s588 = sld [smem:[#allocation2 + $0xe]]
        %v589 = vstv %s588
        %v590 = vmul.f32 %v269, %v589
        %v591 = vmul.f32 %v270, %v589
        %v592 = vmul.f32 %v271, %v589
        %v596 = vrot.slane %v590, 1
        %v597 = vrot.slane %v591, 1
        %v598 = vsel %vm422, %v596, %v597
        %v599 = vrot.slane %v592, 1
        %v600 = vsel %vm422, %v597, %v599
        %601 = vrot.lane.b32.xlu0 %v598, 126
        %v602 = vpop.permute.xlu0 %601
        %603 = vrot.lane.b32.xlu0 %v600, 126
        %v604 = vpop.permute.xlu0 %603
        %v607 = vadd.f32 %v523, %v602
        %v608 = vadd.f32 %v524, %v604
        %s609 = sld [smem:[#allocation2 + $0x17]]
        %v610 = vstv %s609
        %v611 = vmul.f32 %v272, %v610
        %v612 = vmul.f32 %v273, %v610
        %v613 = vmul.f32 %v274, %v610
        %v617 = vrot.slane %v611, 1
        %v618 = vrot.slane %v612, 1
        %v619 = vsel %vm422, %v617, %v618
        %v620 = vrot.slane %v613, 1
        %v621 = vsel %vm422, %v618, %v620
        %622 = vrot.lane.b32.xlu0 %v619, 126
        %v623 = vpop.permute.xlu0 %622
        %624 = vrot.lane.b32.xlu0 %v621, 126
        %v625 = vpop.permute.xlu0 %624
        %v628 = vadd.f32 %v544, %v623
        %v629 = vadd.f32 %v545, %v625
        %s630 = sld [smem:[#allocation2 + $0x20]]
        %v631 = vstv %s630
        %v632 = vmul.f32 %v275, %v631
        %v633 = vmul.f32 %v276, %v631
        %v634 = vmul.f32 %v277, %v631
        %v638 = vrot.slane %v632, 1
        %v639 = vrot.slane %v633, 1
        %v640 = vsel %vm422, %v638, %v639
        %v641 = vrot.slane %v634, 1
        %v642 = vsel %vm422, %v639, %v641
        %643 = vrot.lane.b32.xlu0 %v640, 126
        %v644 = vpop.permute.xlu0 %643
        %645 = vrot.lane.b32.xlu0 %v642, 126
        %v646 = vpop.permute.xlu0 %645
        %v649 = vadd.f32 %v565, %v644
        %v650 = vadd.f32 %v566, %v646
        %s651 = sld [smem:[#allocation2 + $0x6]]
        %v652 = vstv %s651
        %v653 = vmul.f32 %v266, %v652
        %v654 = vmul.f32 %v267, %v652
        %v655 = vmul.f32 %v268, %v652
        %vm659 = vcmask 1045504
        %v660 = vrot.slane %v653, 2
        %v661 = vrot.slane %v654, 2
        %v662 = vsel %vm659, %v660, %v661
        %v663 = vrot.slane %v655, 2
        %v664 = vsel %vm659, %v661, %v663
        %v667 = vadd.f32 %v586, %v662
        %v668 = vadd.f32 %v587, %v664
        %s669 = sld [smem:[#allocation2 + $0xf]]
        %v670 = vstv %s669
        %v671 = vmul.f32 %v269, %v670
        %v672 = vmul.f32 %v270, %v670
        %v673 = vmul.f32 %v271, %v670
        %v677 = vrot.slane %v671, 2
        %v678 = vrot.slane %v672, 2
        %v679 = vsel %vm659, %v677, %v678
        %v680 = vrot.slane %v673, 2
        %v681 = vsel %vm659, %v678, %v680
        %v684 = vadd.f32 %v607, %v679
        %v685 = vadd.f32 %v608, %v681
        %s686 = sld [smem:[#allocation2 + $0x18]]
        %v687 = vstv %s686
        %v688 = vmul.f32 %v272, %v687
        %v689 = vmul.f32 %v273, %v687
        %v690 = vmul.f32 %v274, %v687
        %v694 = vrot.slane %v688, 2
        %v695 = vrot.slane %v689, 2
        %v696 = vsel %vm659, %v694, %v695
        %v697 = vrot.slane %v690, 2
        %v698 = vsel %vm659, %v695, %v697
        %v701 = vadd.f32 %v628, %v696
        %v702 = vadd.f32 %v629, %v698
        %s703 = sld [smem:[#allocation2 + $0x21]]
        %v704 = vstv %s703
        %v705 = vmul.f32 %v275, %v704
        %v706 = vmul.f32 %v276, %v704
        %v707 = vmul.f32 %v277, %v704
        %v711 = vrot.slane %v705, 2
        %v712 = vrot.slane %v706, 2
        %v713 = vsel %vm659, %v711, %v712
        %v714 = vrot.slane %v707, 2
        %v715 = vsel %vm659, %v712, %v714
        %v718 = vadd.f32 %v649, %v713
        %v719 = vadd.f32 %v650, %v715
        %s720 = sld [smem:[#allocation2 + $0x7]]
        %v721 = vstv %s720
        %v722 = vmul.f32 %v266, %v721
        %v723 = vmul.f32 %v267, %v721
        %v724 = vmul.f32 %v268, %v721
        %v728 = vrot.slane %v722, 2
        %v729 = vrot.slane %v723, 2
        %v730 = vsel %vm659, %v728, %v729
        %v731 = vrot.slane %v724, 2
        %v732 = vsel %vm659, %v729, %v731
        %733 = vrot.lane.b32.xlu0 %v730, 127
        %v734 = vpop.permute.xlu0 %733
        %735 = vrot.lane.b32.xlu0 %v732, 127
        %v736 = vpop.permute.xlu0 %735
        %v739 = vadd.f32 %v667, %v734
        %v740 = vadd.f32 %v668, %v736
        %s741 = sld [smem:[#allocation2 + $0x10]]
        %v742 = vstv %s741
        %v743 = vmul.f32 %v269, %v742
        %v744 = vmul.f32 %v270, %v742
        %v745 = vmul.f32 %v271, %v742
        %v749 = vrot.slane %v743, 2
        %v750 = vrot.slane %v744, 2
        %v751 = vsel %vm659, %v749, %v750
        %v752 = vrot.slane %v745, 2
        %v753 = vsel %vm659, %v750, %v752
        %754 = vrot.lane.b32.xlu0 %v751, 127
        %v755 = vpop.permute.xlu0 %754
        %756 = vrot.lane.b32.xlu0 %v753, 127
        %v757 = vpop.permute.xlu0 %756
        %v760 = vadd.f32 %v684, %v755
        %v761 = vadd.f32 %v685, %v757
        %s762 = sld [smem:[#allocation2 + $0x19]]
        %v763 = vstv %s762
        %v764 = vmul.f32 %v272, %v763
        %v765 = vmul.f32 %v273, %v763
        %v766 = vmul.f32 %v274, %v763
        %v770 = vrot.slane %v764, 2
        %v771 = vrot.slane %v765, 2
        %v772 = vsel %vm659, %v770, %v771
        %v773 = vrot.slane %v766, 2
        %v774 = vsel %vm659, %v771, %v773
        %775 = vrot.lane.b32.xlu0 %v772, 127
        %v776 = vpop.permute.xlu0 %775
        %777 = vrot.lane.b32.xlu0 %v774, 127
        %v778 = vpop.permute.xlu0 %777
        %v781 = vadd.f32 %v701, %v776
        %v782 = vadd.f32 %v702, %v778
        %s783 = sld [smem:[#allocation2 + $0x22]]
        %v784 = vstv %s783
        %v785 = vmul.f32 %v275, %v784
        %v786 = vmul.f32 %v276, %v784
        %v787 = vmul.f32 %v277, %v784
        %v791 = vrot.slane %v785, 2
        %v792 = vrot.slane %v786, 2
        %v793 = vsel %vm659, %v791, %v792
        %v794 = vrot.slane %v787, 2
        %v795 = vsel %vm659, %v792, %v794
        %796 = vrot.lane.b32.xlu0 %v793, 127
        %v797 = vpop.permute.xlu0 %796
        %798 = vrot.lane.b32.xlu0 %v795, 127
        %v799 = vpop.permute.xlu0 %798
        %v802 = vadd.f32 %v718, %v797
        %v803 = vadd.f32 %v719, %v799
        %s804 = sld [smem:[#allocation2 + $0x8]]
        %v805 = vstv %s804
        %v806 = vmul.f32 %v266, %v805
        %v807 = vmul.f32 %v267, %v805
        %v808 = vmul.f32 %v268, %v805
        %v812 = vrot.slane %v806, 2
        %v813 = vrot.slane %v807, 2
        %v814 = vsel %vm659, %v812, %v813
        %v815 = vrot.slane %v808, 2
        %v816 = vsel %vm659, %v813, %v815
        %817 = vrot.lane.b32.xlu0 %v814, 126
        %v818 = vpop.permute.xlu0 %817
        %819 = vrot.lane.b32.xlu0 %v816, 126
        %v820 = vpop.permute.xlu0 %819
        %v823 = vadd.f32 %v739, %v818
        %v824 = vadd.f32 %v740, %v820
        %s825 = sld [smem:[#allocation2 + $0x11]]
        %v826 = vstv %s825
        %v827 = vmul.f32 %v269, %v826
        %v828 = vmul.f32 %v270, %v826
        %v829 = vmul.f32 %v271, %v826
        %v833 = vrot.slane %v827, 2
        %v834 = vrot.slane %v828, 2
        %v835 = vsel %vm659, %v833, %v834
        %v836 = vrot.slane %v829, 2
        %v837 = vsel %vm659, %v834, %v836
        %838 = vrot.lane.b32.xlu0 %v835, 126
        %v839 = vpop.permute.xlu0 %838
        %840 = vrot.lane.b32.xlu0 %v837, 126
        %v841 = vpop.permute.xlu0 %840
        %v844 = vadd.f32 %v760, %v839
        %v845 = vadd.f32 %v761, %v841
        %s846 = sld [smem:[#allocation2 + $0x1a]]
        %v847 = vstv %s846
        %v848 = vmul.f32 %v272, %v847
        %v849 = vmul.f32 %v273, %v847
        %v850 = vmul.f32 %v274, %v847
        %v854 = vrot.slane %v848, 2
        %v855 = vrot.slane %v849, 2
        %v856 = vsel %vm659, %v854, %v855
        %v857 = vrot.slane %v850, 2
        %v858 = vsel %vm659, %v855, %v857
        %859 = vrot.lane.b32.xlu0 %v856, 126
        %v860 = vpop.permute.xlu0 %859
        %861 = vrot.lane.b32.xlu0 %v858, 126
        %v862 = vpop.permute.xlu0 %861
        %v865 = vadd.f32 %v781, %v860
        %v866 = vadd.f32 %v782, %v862
        %s867 = sld [smem:[#allocation2 + $0x23]]
        %v868 = vstv %s867
        %v869 = vmul.f32 %v275, %v868
        %v870 = vmul.f32 %v276, %v868
        %v871 = vmul.f32 %v277, %v868
        %v875 = vrot.slane %v869, 2
        %v876 = vrot.slane %v870, 2
        %v877 = vsel %vm659, %v875, %v876
        %v878 = vrot.slane %v871, 2
        %v879 = vsel %vm659, %v876, %v878
        %880 = vrot.lane.b32.xlu0 %v877, 126
        %v881 = vpop.permute.xlu0 %880
        %882 = vrot.lane.b32.xlu0 %v879, 126
        %v883 = vpop.permute.xlu0 %882
        %v886 = vadd.f32 %v802, %v881
        %v887 = vadd.f32 %v803, %v883
        %s888 = sld [smem:[#allocation5]]
        %v889 = vstv %s888
        %v890 = vmul.f32 %v823, %v889
        %v891 = vmul.f32 %v824, %v889
        %s892 = sld [smem:[#allocation5 + $0x1]]
        %v893 = vstv %s892
        %v894 = vmul.f32 %v844, %v893
        %v895 = vmul.f32 %v845, %v893
        %v896 = vadd.f32 %v890, %v894
        %v897 = vadd.f32 %v891, %v895
        %s898 = sld [smem:[#allocation5 + $0x2]]
        %v899 = vstv %s898
        %v900 = vmul.f32 %v865, %v899
        %v901 = vmul.f32 %v866, %v899
        %v902 = vadd.f32 %v896, %v900
        %v903 = vadd.f32 %v897, %v901
        %s904 = sld [smem:[#allocation5 + $0x3]]
        %v905 = vstv %s904
        %v906 = vmul.f32 %v886, %v905
        %v907 = vmul.f32 %v887, %v905
        %v908 = vadd.f32 %v902, %v906
        %v909 = vadd.f32 %v903, %v907
        %s910 = sld [smem:[#allocation7]]
        %v911 = vstv %s910
        %v912 = vadd.f32 %v908, %v911
        %v913 = vadd.f32 %v909, %v911
        %vm914 = vcmask 130048
        %915 = vst.msk [vmem:[%s254] sm:$0xff] %vm914, %v912
        %916 = vst.msk [vmem:[%s254 + $0x8] sm:$0xff] %vm914, %v913
        %s917 = sld [smem:[#allocation5 + $0x4]]
        %v918 = vstv %s917
        %v919 = vmul.f32 %v823, %v918
        %v920 = vmul.f32 %v824, %v918
        %s921 = sld [smem:[#allocation5 + $0x5]]
        %v922 = vstv %s921
        %v923 = vmul.f32 %v844, %v922
        %v924 = vmul.f32 %v845, %v922
        %v925 = vadd.f32 %v919, %v923
        %v926 = vadd.f32 %v920, %v924
        %s927 = sld [smem:[#allocation5 + $0x6]]
        %v928 = vstv %s927
        %v929 = vmul.f32 %v865, %v928
        %v930 = vmul.f32 %v866, %v928
        %v931 = vadd.f32 %v925, %v929
        %v932 = vadd.f32 %v926, %v930
        %s933 = sld [smem:[#allocation5 + $0x7]]
        %v934 = vstv %s933
        %v935 = vmul.f32 %v886, %v934
        %v936 = vmul.f32 %v887, %v934
        %v937 = vadd.f32 %v931, %v935
        %v938 = vadd.f32 %v932, %v936
        %s939 = sld [smem:[#allocation7 + $0x1]]
        %v940 = vstv %s939
        %v941 = vadd.f32 %v937, %v940
        %v942 = vadd.f32 %v938, %v940
        %s943 = scalar_lea.vmem %s254, 16 [#allocation8]
        %944 = vst.msk [vmem:[%s943] sm:$0xff] %vm914, %v941
        %945 = vst.msk [vmem:[%s943 + $0x8] sm:$0xff] %vm914, %v942
        %s946 = sld [smem:[#allocation5 + $0x8]]
        %v947 = vstv %s946
        %v948 = vmul.f32 %v823, %v947
        %v949 = vmul.f32 %v824, %v947
        %s950 = sld [smem:[#allocation5 + $0x9]]
        %v951 = vstv %s950
        %v952 = vmul.f32 %v844, %v951
        %v953 = vmul.f32 %v845, %v951
        %v954 = vadd.f32 %v948, %v952
        %v955 = vadd.f32 %v949, %v953
        %s956 = sld [smem:[#allocation5 + $0xa]]
        %v957 = vstv %s956
        %v958 = vmul.f32 %v865, %v957
        %v959 = vmul.f32 %v866, %v957
        %v960 = vadd.f32 %v954, %v958
        %v961 = vadd.f32 %v955, %v959
        %s962 = sld [smem:[#allocation5 + $0xb]]
        %v963 = vstv %s962
        %v964 = vmul.f32 %v886, %v963
        %v965 = vmul.f32 %v887, %v963
        %v966 = vadd.f32 %v960, %v964
        %v967 = vadd.f32 %v961, %v965
        %s968 = sld [smem:[#allocation7 + $0x2]]
        %v969 = vstv %s968
        %v970 = vadd.f32 %v966, %v969
        %v971 = vadd.f32 %v967, %v969
        %s972 = scalar_lea.vmem %s254, 32 [#allocation8]
        %973 = vst.msk [vmem:[%s972] sm:$0xff] %vm914, %v970
        %974 = vst.msk [vmem:[%s972 + $0x8] sm:$0xff] %vm914, %v971
        %s975 = sld [smem:[#allocation5 + $0xc]]
        %v976 = vstv %s975
        %v977 = vmul.f32 %v823, %v976
        %v978 = vmul.f32 %v824, %v976
        %s979 = sld [smem:[#allocation5 + $0xd]]
        %v980 = vstv %s979
        %v981 = vmul.f32 %v844, %v980
        %v982 = vmul.f32 %v845, %v980
        %v983 = vadd.f32 %v977, %v981
        %v984 = vadd.f32 %v978, %v982
        %s985 = sld [smem:[#allocation5 + $0xe]]
        %v986 = vstv %s985
        %v987 = vmul.f32 %v865, %v986
        %v988 = vmul.f32 %v866, %v986
        %v989 = vadd.f32 %v983, %v987
        %v990 = vadd.f32 %v984, %v988
        %s991 = sld [smem:[#allocation5 + $0xf]]
        %v992 = vstv %s991
        %v993 = vmul.f32 %v886, %v992
        %v994 = vmul.f32 %v887, %v992
        %v995 = vadd.f32 %v989, %v993
        %v996 = vadd.f32 %v990, %v994
        %s997 = sld [smem:[#allocation7 + $0x3]]
        %v998 = vstv %s997
        %v999 = vadd.f32 %v995, %v998
        %v1000 = vadd.f32 %v996, %v998
        %s1001 = scalar_lea.vmem %s254, 48 [#allocation8]
        %1002 = vst.msk [vmem:[%s1001] sm:$0xff] %vm914, %v999
        %1003 = vst.msk [vmem:[%s1001 + $0x8] sm:$0xff] %vm914, %v1000
        %s1004 = sld [smem:[#allocation5 + $0x10]]
        %v1005 = vstv %s1004
        %v1006 = vmul.f32 %v823, %v1005
        %v1007 = vmul.f32 %v824, %v1005
        %s1008 = sld [smem:[#allocation5 + $0x11]]
        %v1009 = vstv %s1008
        %v1010 = vmul.f32 %v844, %v1009
        %v1011 = vmul.f32 %v845, %v1009
        %v1012 = vadd.f32 %v1006, %v1010
        %v1013 = vadd.f32 %v1007, %v1011
        %s1014 = sld [smem:[#allocation5 + $0x12]]
        %v1015 = vstv %s1014
        %v1016 = vmul.f32 %v865, %v1015
        %v1017 = vmul.f32 %v866, %v1015
        %v1018 = vadd.f32 %v1012, %v1016
        %v1019 = vadd.f32 %v1013, %v1017
        %s1020 = sld [smem:[#allocation5 + $0x13]]
        %v1021 = vstv %s1020
        %v1022 = vmul.f32 %v886, %v1021
        %v1023 = vmul.f32 %v887, %v1021
        %v1024 = vadd.f32 %v1018, %v1022
        %v1025 = vadd.f32 %v1019, %v1023
        %s1026 = sld [smem:[#allocation7 + $0x4]]
        %v1027 = vstv %s1026
        %v1028 = vadd.f32 %v1024, %v1027
        %v1029 = vadd.f32 %v1025, %v1027
        %s1030 = scalar_lea.vmem %s254, 64 [#allocation8]
        %1031 = vst.msk [vmem:[%s1030] sm:$0xff] %vm914, %v1028
        %1032 = vst.msk [vmem:[%s1030 + $0x8] sm:$0xff] %vm914, %v1029
        %s1033 = sld [smem:[#allocation5 + $0x14]]
        %v1034 = vstv %s1033
        %v1035 = vmul.f32 %v823, %v1034
        %v1036 = vmul.f32 %v824, %v1034
        %s1037 = sld [smem:[#allocation5 + $0x15]]
        %v1038 = vstv %s1037
        %v1039 = vmul.f32 %v844, %v1038
        %v1040 = vmul.f32 %v845, %v1038
        %v1041 = vadd.f32 %v1035, %v1039
        %v1042 = vadd.f32 %v1036, %v1040
        %s1043 = sld [smem:[#allocation5 + $0x16]]
        %v1044 = vstv %s1043
        %v1045 = vmul.f32 %v865, %v1044
        %v1046 = vmul.f32 %v866, %v1044
        %v1047 = vadd.f32 %v1041, %v1045
        %v1048 = vadd.f32 %v1042, %v1046
        %s1049 = sld [smem:[#allocation5 + $0x17]]
        %v1050 = vstv %s1049
        %v1051 = vmul.f32 %v886, %v1050
        %v1052 = vmul.f32 %v887, %v1050
        %v1053 = vadd.f32 %v1047, %v1051
        %v1054 = vadd.f32 %v1048, %v1052
        %s1055 = sld [smem:[#allocation7 + $0x5]]
        %v1056 = vstv %s1055
        %v1057 = vadd.f32 %v1053, %v1056
        %v1058 = vadd.f32 %v1054, %v1056
        %s1059 = scalar_lea.vmem %s254, 80 [#allocation8]
        %1060 = vst.msk [vmem:[%s1059] sm:$0xff] %vm914, %v1057
        %1061 = vst.msk [vmem:[%s1059 + $0x8] sm:$0xff] %vm914, %v1058
        %s1062 = sld [smem:[#allocation5 + $0x18]]
        %v1063 = vstv %s1062
        %v1064 = vmul.f32 %v823, %v1063
        %v1065 = vmul.f32 %v824, %v1063
        %s1066 = sld [smem:[#allocation5 + $0x19]]
        %v1067 = vstv %s1066
        %v1068 = vmul.f32 %v844, %v1067
        %v1069 = vmul.f32 %v845, %v1067
        %v1070 = vadd.f32 %v1064, %v1068
        %v1071 = vadd.f32 %v1065, %v1069
        %s1072 = sld [smem:[#allocation5 + $0x1a]]
        %v1073 = vstv %s1072
        %v1074 = vmul.f32 %v865, %v1073
        %v1075 = vmul.f32 %v866, %v1073
        %v1076 = vadd.f32 %v1070, %v1074
        %v1077 = vadd.f32 %v1071, %v1075
        %s1078 = sld [smem:[#allocation5 + $0x1b]]
        %v1079 = vstv %s1078
        %v1080 = vmul.f32 %v886, %v1079
        %v1081 = vmul.f32 %v887, %v1079
        %v1082 = vadd.f32 %v1076, %v1080
        %v1083 = vadd.f32 %v1077, %v1081
        %s1084 = sld [smem:[#allocation7 + $0x6]]
        %v1085 = vstv %s1084
        %v1086 = vadd.f32 %v1082, %v1085
        %v1087 = vadd.f32 %v1083, %v1085
        %s1088 = scalar_lea.vmem %s254, 96 [#allocation8]
        %1089 = vst.msk [vmem:[%s1088] sm:$0xff] %vm914, %v1086
        %1090 = vst.msk [vmem:[%s1088 + $0x8] sm:$0xff] %vm914, %v1087
        %s1091 = sld [smem:[#allocation5 + $0x1c]]
        %v1092 = vstv %s1091
        %v1093 = vmul.f32 %v823, %v1092
        %v1094 = vmul.f32 %v824, %v1092
        %s1095 = sld [smem:[#allocation5 + $0x1d]]
        %v1096 = vstv %s1095
        %v1097 = vmul.f32 %v844, %v1096
        %v1098 = vmul.f32 %v845, %v1096
        %v1099 = vadd.f32 %v1093, %v1097
        %v1100 = vadd.f32 %v1094, %v1098
        %s1101 = sld [smem:[#allocation5 + $0x1e]]
        %v1102 = vstv %s1101
        %v1103 = vmul.f32 %v865, %v1102
        %v1104 = vmul.f32 %v866, %v1102
        %v1105 = vadd.f32 %v1099, %v1103
        %v1106 = vadd.f32 %v1100, %v1104
        %s1107 = sld [smem:[#allocation5 + $0x1f]]
        %v1108 = vstv %s1107
        %v1109 = vmul.f32 %v886, %v1108
        %v1110 = vmul.f32 %v887, %v1108
        %v1111 = vadd.f32 %v1105, %v1109
        %v1112 = vadd.f32 %v1106, %v1110
        %s1113 = sld [smem:[#allocation7 + $0x7]]
        %v1114 = vstv %s1113
        %v1115 = vadd.f32 %v1111, %v1114
        %v1116 = vadd.f32 %v1112, %v1114
        %s1117 = scalar_lea.vmem %s254, 112 [#allocation8]
        %1118 = vst.msk [vmem:[%s1117] sm:$0xff] %vm914, %v1115
        %1119 = vst.msk [vmem:[%s1117 + $0x8] sm:$0xff] %vm914, %v1116
        %s1120 = sand.u32 %s133, 1
        %s1121 = scalar_lea.sflag [#allocation3], %s1120
        %s1122 = sand.u32 %s133, 1
        %s1123 = smul.addr %s1122, 128
        %s1124 = scalar_lea.vmem [#allocation8], %s1123
        // Predicated region
        $region49: #{tpu_custom_call.1} parent=35 // pred_check
          %p1125 = pneg %p143
        $region50: #{tpu_custom_call.1} parent=35 // pred_check_branch
          %1127 = sbr.rel (%p1125) target = $region52
        $region51: #{tpu_custom_call.1} parent=35 // pred_region
          %s1128 = smul.u32 2, %s25
          %s1130 = ssub.s32 2048, 2048
          %1131 = vsyncadd %s1121, %s1130
          %s1132 = smul.addr %s24, 16
          %s1133 = sadd.s32 %s1128, %s1132
          %s1134 = smul.addr %s1133, 128
          %s1135 = scalar_lea.hbm %s4, %s1134
          %s1136 = sshll.u32 %s1124, 4
          %s1137 = int_to_ptr.vmem [resolvable:$true] %s1136
          %1142 = dma.vmem_to_hbm [thread:$0]  %s1137, 2048, %s1135, %s1121, 128, 128, 8
        $region52: #{tpu_custom_call.1} parent=35 // pred_fallthru
          _
      $region36: #{tpu_custom_call.1} parent=5 // pred_fallthru
        _
      %p1143 = scmp.le.s32.totalorder 2, %s15
      // Predicated region
      $region53: #{tpu_custom_call.1} parent=5 // pred_check
        %p1144 = pneg %p1143
      $region54: #{tpu_custom_call.1} parent=5 // pred_check_branch
        %1146 = sbr.rel (%p1144) target = $region56
      $region55: #{tpu_custom_call.1} parent=5 // pred_region
        %s1147 = ssub.s32 %s15, 2
        // Predicated region
        $region57: #{tpu_custom_call.1} parent=55 // pred_check
          %p1148 = pneg %p149
        $region58: #{tpu_custom_call.1} parent=55 // pred_check_branch
          %1150 = sbr.rel (%p1148) target = $region60
        $region59: #{tpu_custom_call.1} parent=55 // pred_region
          %s1151 = sand.u32 %s134, 1
          %s1152 = scalar_lea.sflag [#allocation3], %s1151
          %s1153 = sand.u32 %s134, 1
          %s1154 = smul.addr %s1153, 128
          %s1155 = scalar_lea.vmem [#allocation8], %s1154
          %1156 = dma.done %s1152, 2048
        $region60: #{tpu_custom_call.1} parent=55 // pred_fallthru
          _
      $region56: #{tpu_custom_call.1} parent=5 // pred_fallthru
        _
    $region6: #{tpu_custom_call.1} parent=1 // loop_footer
      %s19 = sadd.s32 1, %s15
    $region7: #{tpu_custom_call.1} parent=1 // loop_footer_branch
      %14 = sbr.rel target = $region3
    $region8: #{tpu_custom_call.1} parent=1 // loop_exit
      _
    %1157 = vsyncpa [#allocation3], 1
    %s1158 = scalar_lea.sflag [#allocation3], 1
    %1159 = vsyncpa %s1158, 1
    %1160 = vsyncpa [#allocation4], 1
    %s1161 = scalar_lea.sflag [#allocation4], 1
    %1162 = vsyncpa %s1161, 1
    %1163 = vsyncpa [#allocation6], 1

</llo_original>
